<compile_context>
chip_gen: v6e
topology: v6e:2x2x1
jax: 0.10.0
libtpu: 0.0.40
codegen_flags: <defaults>
</compile_context>

<pallas_src>
import functools
import math

import jax
import jax.numpy as jnp
from jax.experimental import pallas as pl
from jax.experimental.pallas import tpu as pltpu


def _mha_kernel(x_ref, wqkv_ref, bqkv_ref, wout_ref, bout_ref,
                o_ref, probs_ref, logits_ref, *, num_heads, scaling):
    # x_ref:      (1, T, E)      one batch element's query slab
    # wqkv_ref:   (E, 3E)        in_proj_weight.T (q|k|v fused)
    # bqkv_ref:   (1, 3E)        in_proj_bias
    # wout_ref:   (E, E)         out_proj.weight.T
    # bout_ref:   (1, E)         out_proj.bias
    # o_ref:      (1, T, E)      attention output
    # probs_ref:  (1, H, T, T)   per-head softmax weights (float32)
    # logits_ref: (1, H, T, T)   per-head pre-softmax logits (float32)
    x = x_ref[0].astype(jnp.float32)                      # (T, E)
    t_len, e_dim = x.shape
    d_head = e_dim // num_heads

    # Fused QKV projection: one MXU matmul instead of three.
    qkv = jnp.dot(x, wqkv_ref[...].astype(jnp.float32),
                  preferred_element_type=jnp.float32)     # (T, 3E)
    qkv = qkv + bqkv_ref[...].astype(jnp.float32)

    q = qkv[:, :e_dim] * scaling
    k = qkv[:, e_dim:2 * e_dim]
    v = qkv[:, 2 * e_dim:]

    wout = wout_ref[...].astype(jnp.float32)              # (E, E), hoisted

    # Per-head attention; the output projection is folded into the head loop
    # as an accumulated matmul (attn @ Wout == sum_h attn_h @ Wout[hD:(h+1)D]).
    out = jnp.zeros((t_len, e_dim), jnp.float32)
    for h in range(num_heads):                            # H is small & static
        lo, hi = h * d_head, (h + 1) * d_head
        q_h = q[:, lo:hi]                                  # (T, D)
        k_h = k[:, lo:hi]
        v_h = v[:, lo:hi]

        logits = jnp.dot(q_h, k_h.T,
                         preferred_element_type=jnp.float32)   # (T, T)
        m = jnp.max(logits, axis=-1, keepdims=True)
        e = jnp.exp(logits - m)
        p = e / jnp.sum(e, axis=-1, keepdims=True)              # softmax, f32

        attn_h = jnp.dot(p, v_h, preferred_element_type=jnp.float32)  # (T, D)
        out = out + jnp.dot(attn_h, wout[lo:hi, :],
                            preferred_element_type=jnp.float32)

        logits_ref[0, h, :, :] = logits.astype(logits_ref.dtype)
        probs_ref[0, h, :, :] = p.astype(probs_ref.dtype)

    out = out + bout_ref[...].astype(jnp.float32)
    o_ref[0] = out.astype(o_ref.dtype)


def multihead_self_attention(query, in_proj_weight, in_proj_bias,
                             out_proj_weight, out_proj_bias, *, num_heads):
    """query: (T, B, E) float32 (PyTorch Time x Batch x Channel layout).
    in_proj_weight: (3E, E), in_proj_bias: (3E,)
    out_proj_weight: (E, E), out_proj_bias: (E,)
    returns (attn (T,B,E), (attn_weights (B,T,T) mean over heads,
                            attn_logits (B,H,T,T)))."""
    T, B, E = query.shape
    H = num_heads
    D = E // H
    assert D * H == E, "embed_dim must be divisible by num_heads"
    scaling = float(D) ** -0.5

    # Layout plumbing only (tiny): batch-major for the per-batch grid.
    x_bte = jnp.transpose(query, (1, 0, 2))                # (B, T, E)
    w_qkv = jnp.transpose(in_proj_weight, (1, 0))          # (E, 3E)
    b_qkv = in_proj_bias.reshape(1, 3 * E)
    w_out = jnp.transpose(out_proj_weight, (1, 0))         # (E, E)
    b_out = out_proj_bias.reshape(1, E)

    kernel = functools.partial(_mha_kernel, num_heads=H, scaling=scaling)

    attn_bte, probs, logits = pl.pallas_call(
        kernel,
        out_shape=(
            jax.ShapeDtypeStruct((B, T, E), query.dtype),
            jax.ShapeDtypeStruct((B, H, T, T), jnp.float32),
            jax.ShapeDtypeStruct((B, H, T, T), jnp.float32),
        ),
        grid_spec=pltpu.PrefetchScalarGridSpec(
            num_scalar_prefetch=0,
            grid=(B,),
            in_specs=[
                pl.BlockSpec((1, T, E), lambda b: (b, 0, 0)),
                pl.BlockSpec((E, 3 * E), lambda b: (0, 0)),
                pl.BlockSpec((1, 3 * E), lambda b: (0, 0)),
                pl.BlockSpec((E, E), lambda b: (0, 0)),
                pl.BlockSpec((1, E), lambda b: (0, 0)),
            ],
            out_specs=[
                pl.BlockSpec((1, T, E), lambda b: (b, 0, 0)),
                pl.BlockSpec((1, H, T, T), lambda b: (b, 0, 0, 0)),
                pl.BlockSpec((1, H, T, T), lambda b: (b, 0, 0, 0)),
            ],
        ),
        compiler_params=pltpu.CompilerParams(
            dimension_semantics=("parallel",)),
    )(x_bte, w_qkv, b_qkv, w_out, b_out)

    attn = jnp.transpose(attn_bte, (1, 0, 2))              # (T, B, E)
    attn_weights = jnp.mean(probs, axis=1)                 # (B, T, T)
    return attn, (attn_weights, logits)


def _reference_mha(query, in_proj_weight, in_proj_bias,
                   out_proj_weight, out_proj_bias, *, num_heads):
    """Pure-JAX reference mirroring the module's explicit self-attention path."""
    T, B, E = query.shape
    H = num_heads
    D = E // H
    scaling = float(D) ** -0.5

    qkv = query @ in_proj_weight.T + in_proj_bias          # (T, B, 3E)
    q, k, v = jnp.split(qkv, 3, axis=-1)
    q = q * scaling

    def heads(x):                                          # (T,B,E) -> (B*H,T,D)
        return jnp.transpose(x.reshape(T, B * H, D), (1, 0, 2))

    q, k, v = heads(q), heads(k), heads(v)
    logits = jnp.einsum('btd,bsd->bts', q, k)              # (B*H, T, T)
    probs = jax.nn.softmax(logits, axis=-1)
    attn = jnp.einsum('bts,bsd->btd', probs, v)            # (B*H, T, D)
    attn = jnp.transpose(attn, (1, 0, 2)).reshape(T, B, E)
    attn = attn @ out_proj_weight.T + out_proj_bias

    attn_logits = logits.reshape(B, H, T, T)
    attn_weights = jnp.mean(probs.reshape(B, H, T, T), axis=1)
    return attn, (attn_weights, attn_logits)


if __name__ == "__main__":
    # Small shapes consistent with the module: seq=8, batch=2, embed=32, heads=4.
    T, B, E, H = 8, 2, 32, 4

    key = jax.random.PRNGKey(0)
    kq, kw, ko = jax.random.split(key, 3)

    # Deterministic xavier_uniform-style init (same shapes as the PyTorch module).
    bound_in = math.sqrt(6.0 / (3 * E + E))
    in_proj_weight = jax.random.uniform(kw, (3 * E, E), jnp.float32,
                                        -bound_in, bound_in)
    in_proj_bias = jnp.zeros((3 * E,), jnp.float32)
    bound_out = math.sqrt(6.0 / (E + E))
    out_proj_weight = jax.random.uniform(ko, (E, E), jnp.float32,
                                         -bound_out, bound_out)
    out_proj_bias = jnp.zeros((E,), jnp.float32)

    query = jax.random.normal(kq, (T, B, E), jnp.float32)  # (Time, Batch, Chan)

    # TODO(synk): dropout (training-mode), key_padding_mask/attn_mask and the
    # incremental-state decode cache are not exercised by this forward config.
    attn, (weights, logits) = multihead_self_attention(
        query, in_proj_weight, in_proj_bias, out_proj_weight, out_proj_bias,
        num_heads=H)
    attn, weights, logits = jax.block_until_ready((attn, weights, logits))

    ref_attn, (ref_w, ref_l) = _reference_mha(
        query, in_proj_weight, in_proj_bias, out_proj_weight, out_proj_bias,
        num_heads=H)

    assert attn.shape == (T, B, E), attn.shape
    assert weights.shape == (B, T, T), weights.shape
    assert logits.shape == (B, H, T, T), logits.shape
    assert jnp.allclose(attn, ref_attn, atol=2e-2, rtol=2e-2), "attn mismatch"
    assert jnp.allclose(logits, ref_l, atol=2e-2, rtol=2e-2), "logits mismatch"
    assert jnp.allclose(weights, ref_w, atol=2e-2, rtol=2e-2), "weights mismatch"

    print("KERNEL_OK")
</pallas_src>

<mosaic_0001>
module attributes {stable_mosaic.version = 11 : i64} {
  func.func @_mha_kernel(%arg0: i32, %arg1: memref<1x8x32xf32, #tpu.memory_space<vmem>>, %arg2: memref<32x96xf32, #tpu.memory_space<vmem>>, %arg3: memref<1x96xf32, #tpu.memory_space<vmem>>, %arg4: memref<32x32xf32, #tpu.memory_space<vmem>>, %arg5: memref<1x32xf32, #tpu.memory_space<vmem>>, %arg6: memref<1x8x32xf32, #tpu.memory_space<vmem>>, %arg7: memref<1x4x8x8xf32, #tpu.memory_space<vmem>>, %arg8: memref<1x4x8x8xf32, #tpu.memory_space<vmem>>) attributes {dimension_semantics = [#tpu.dimension_semantics<parallel>], iteration_bounds = array<i64: 2>, scalar_prefetch = 0 : i64, scratch_operands = 0 : i64, tpu.core_type = #tpu.core_type<tc>, window_params = [{transform_indices = @transform_0, window_bounds = array<i64: 1, 8, 32>}, {pipeline_mode = #tpu.pipeline_mode<synchronous>, transform_indices = @transform_1, window_bounds = array<i64: 32, 96>}, {pipeline_mode = #tpu.pipeline_mode<synchronous>, transform_indices = @transform_2, window_bounds = array<i64: 1, 96>}, {pipeline_mode = #tpu.pipeline_mode<synchronous>, transform_indices = @transform_3, window_bounds = array<i64: 32, 32>}, {pipeline_mode = #tpu.pipeline_mode<synchronous>, transform_indices = @transform_4, window_bounds = array<i64: 1, 32>}, {transform_indices = @transform_5, window_bounds = array<i64: 1, 8, 32>}, {transform_indices = @transform_6, window_bounds = array<i64: 1, 4, 8, 8>}, {transform_indices = @transform_7, window_bounds = array<i64: 1, 4, 8, 8>}]} {
    %c0 = arith.constant 0 : index
    %c0_0 = arith.constant 0 : index
    %c0_1 = arith.constant 0 : index
    %0 = vector.load %arg1[%c0, %c0_0, %c0_1] : memref<1x8x32xf32, #tpu.memory_space<vmem>>, vector<1x8x32xf32>
    %1 = vector.shape_cast %0 : vector<1x8x32xf32> to vector<8x32xf32>
    %c0_2 = arith.constant 0 : index
    %c0_3 = arith.constant 0 : index
    %2 = vector.load %arg2[%c0_2, %c0_3] : memref<32x96xf32, #tpu.memory_space<vmem>>, vector<32x96xf32>
    %cst = arith.constant dense<0.000000e+00> : vector<8x96xf32>
    %3 = tpu.matmul %1, %2, %cst {dimension_numbers = #tpu.dot_dimension_numbers<[1], [0], [0], [1], [0, 0, 1, 1], [], []>} : vector<8x32xf32>, vector<32x96xf32>, vector<8x96xf32> -> vector<8x96xf32>
    %c0_4 = arith.constant 0 : index
    %c0_5 = arith.constant 0 : index
    %4 = vector.load %arg3[%c0_4, %c0_5] : memref<1x96xf32, #tpu.memory_space<vmem>>, vector<1x96xf32>
    %5 = vector.broadcast %4 : vector<1x96xf32> to vector<8x96xf32>
    %6 = arith.addf %3, %5 : vector<8x96xf32>
    %7 = vector.extract_strided_slice %6 {offsets = [0, 0], sizes = [8, 32], strides = [1, 1]} : vector<8x96xf32> to vector<8x32xf32>
    %cst_6 = arith.constant 0.353553385 : f32
    %8 = vector.broadcast %cst_6 : f32 to vector<8x32xf32>
    %9 = arith.mulf %7, %8 : vector<8x32xf32>
    %10 = vector.extract_strided_slice %6 {offsets = [0, 32], sizes = [8, 32], strides = [1, 1]} : vector<8x96xf32> to vector<8x32xf32>
    %11 = vector.extract_strided_slice %6 {offsets = [0, 64], sizes = [8, 32], strides = [1, 1]} : vector<8x96xf32> to vector<8x32xf32>
    %c0_7 = arith.constant 0 : index
    %c0_8 = arith.constant 0 : index
    %12 = vector.load %arg4[%c0_7, %c0_8] : memref<32x32xf32, #tpu.memory_space<vmem>>, vector<32x32xf32>
    %cst_9 = arith.constant 0.000000e+00 : f32
    %13 = vector.broadcast %cst_9 : f32 to vector<8x32xf32>
    %14 = vector.extract_strided_slice %9 {offsets = [0, 0], sizes = [8, 8], strides = [1, 1]} : vector<8x32xf32> to vector<8x8xf32>
    %15 = vector.extract_strided_slice %10 {offsets = [0, 0], sizes = [8, 8], strides = [1, 1]} : vector<8x32xf32> to vector<8x8xf32>
    %16 = vector.extract_strided_slice %11 {offsets = [0, 0], sizes = [8, 8], strides = [1, 1]} : vector<8x32xf32> to vector<8x8xf32>
    %17 = tpu.transpose %15, [1, 0] : vector<8x8xf32> -> vector<8x8xf32>
    %cst_10 = arith.constant dense<0.000000e+00> : vector<8x8xf32>
    %18 = tpu.matmul %14, %17, %cst_10 {dimension_numbers = #tpu.dot_dimension_numbers<[1], [0], [0], [1], [0, 0, 1, 1], [], []>} : vector<8x8xf32>, vector<8x8xf32>, vector<8x8xf32> -> vector<8x8xf32>
    %cst_11 = arith.constant dense<0xFF800000> : vector<8xf32>
    %19 = vector.multi_reduction <maximumf>, %18, %cst_11 [1] : vector<8x8xf32> to vector<8xf32>
    %20 = vector.shape_cast %19 : vector<8xf32> to vector<8x1xf32>
    %21 = vector.broadcast %20 : vector<8x1xf32> to vector<8x8xf32>
    %22 = arith.subf %18, %21 : vector<8x8xf32>
    %23 = math.exp %22 : vector<8x8xf32>
    %cst_12 = arith.constant dense<0.000000e+00> : vector<8xf32>
    %24 = vector.multi_reduction <add>, %23, %cst_12 [1] : vector<8x8xf32> to vector<8xf32>
    %25 = vector.shape_cast %24 : vector<8xf32> to vector<8x1xf32>
    %26 = vector.broadcast %25 : vector<8x1xf32> to vector<8x8xf32>
    %27 = arith.divf %23, %26 : vector<8x8xf32>
    %cst_13 = arith.constant dense<0.000000e+00> : vector<8x8xf32>
    %28 = tpu.matmul %27, %16, %cst_13 {dimension_numbers = #tpu.dot_dimension_numbers<[1], [0], [0], [1], [0, 0, 1, 1], [], []>} : vector<8x8xf32>, vector<8x8xf32>, vector<8x8xf32> -> vector<8x8xf32>
    %29 = vector.extract_strided_slice %12 {offsets = [0, 0], sizes = [8, 32], strides = [1, 1]} : vector<32x32xf32> to vector<8x32xf32>
    %cst_14 = arith.constant dense<0.000000e+00> : vector<8x32xf32>
    %30 = tpu.matmul %28, %29, %cst_14 {dimension_numbers = #tpu.dot_dimension_numbers<[1], [0], [0], [1], [0, 0, 1, 1], [], []>} : vector<8x8xf32>, vector<8x32xf32>, vector<8x32xf32> -> vector<8x32xf32>
    %31 = arith.addf %13, %30 : vector<8x32xf32>
    %c0_15 = arith.constant 0 : index
    %c0_16 = arith.constant 0 : index
    %c0_17 = arith.constant 0 : index
    %c0_18 = arith.constant 0 : index
    %32 = vector.load %arg8[%c0_15, %c0_16, %c0_17, %c0_18] : memref<1x4x8x8xf32, #tpu.memory_space<vmem>>, vector<1x1x8x8xf32>
    %33 = vector.shape_cast %32 : vector<1x1x8x8xf32> to vector<8x8xf32>
    %34 = vector.shape_cast %18 : vector<8x8xf32> to vector<1x1x8x8xf32>
    tpu.vector_store %arg8[%c0_15, %c0_16, %c0_17, %c0_18], %34 {strides = array<i32>} : memref<1x4x8x8xf32, #tpu.memory_space<vmem>>, vector<1x1x8x8xf32>,
    %c0_19 = arith.constant 0 : index
    %c0_20 = arith.constant 0 : index
    %c0_21 = arith.constant 0 : index
    %c0_22 = arith.constant 0 : index
    %35 = vector.load %arg7[%c0_19, %c0_20, %c0_21, %c0_22] : memref<1x4x8x8xf32, #tpu.memory_space<vmem>>, vector<1x1x8x8xf32>
    %36 = vector.shape_cast %35 : vector<1x1x8x8xf32> to vector<8x8xf32>
    %37 = vector.shape_cast %27 : vector<8x8xf32> to vector<1x1x8x8xf32>
    tpu.vector_store %arg7[%c0_19, %c0_20, %c0_21, %c0_22], %37 {strides = array<i32>} : memref<1x4x8x8xf32, #tpu.memory_space<vmem>>, vector<1x1x8x8xf32>,
    %38 = vector.extract_strided_slice %9 {offsets = [0, 8], sizes = [8, 8], strides = [1, 1]} : vector<8x32xf32> to vector<8x8xf32>
    %39 = vector.extract_strided_slice %10 {offsets = [0, 8], sizes = [8, 8], strides = [1, 1]} : vector<8x32xf32> to vector<8x8xf32>
    %40 = vector.extract_strided_slice %11 {offsets = [0, 8], sizes = [8, 8], strides = [1, 1]} : vector<8x32xf32> to vector<8x8xf32>
    %41 = tpu.transpose %39, [1, 0] : vector<8x8xf32> -> vector<8x8xf32>
    %cst_23 = arith.constant dense<0.000000e+00> : vector<8x8xf32>
    %42 = tpu.matmul %38, %41, %cst_23 {dimension_numbers = #tpu.dot_dimension_numbers<[1], [0], [0], [1], [0, 0, 1, 1], [], []>} : vector<8x8xf32>, vector<8x8xf32>, vector<8x8xf32> -> vector<8x8xf32>
    %cst_24 = arith.constant dense<0xFF800000> : vector<8xf32>
    %43 = vector.multi_reduction <maximumf>, %42, %cst_24 [1] : vector<8x8xf32> to vector<8xf32>
    %44 = vector.shape_cast %43 : vector<8xf32> to vector<8x1xf32>
    %45 = vector.broadcast %44 : vector<8x1xf32> to vector<8x8xf32>
    %46 = arith.subf %42, %45 : vector<8x8xf32>
    %47 = math.exp %46 : vector<8x8xf32>
    %cst_25 = arith.constant dense<0.000000e+00> : vector<8xf32>
    %48 = vector.multi_reduction <add>, %47, %cst_25 [1] : vector<8x8xf32> to vector<8xf32>
    %49 = vector.shape_cast %48 : vector<8xf32> to vector<8x1xf32>
    %50 = vector.broadcast %49 : vector<8x1xf32> to vector<8x8xf32>
    %51 = arith.divf %47, %50 : vector<8x8xf32>
    %cst_26 = arith.constant dense<0.000000e+00> : vector<8x8xf32>
    %52 = tpu.matmul %51, %40, %cst_26 {dimension_numbers = #tpu.dot_dimension_numbers<[1], [0], [0], [1], [0, 0, 1, 1], [], []>} : vector<8x8xf32>, vector<8x8xf32>, vector<8x8xf32> -> vector<8x8xf32>
    %53 = vector.extract_strided_slice %12 {offsets = [8, 0], sizes = [8, 32], strides = [1, 1]} : vector<32x32xf32> to vector<8x32xf32>
    %cst_27 = arith.constant dense<0.000000e+00> : vector<8x32xf32>
    %54 = tpu.matmul %52, %53, %cst_27 {dimension_numbers = #tpu.dot_dimension_numbers<[1], [0], [0], [1], [0, 0, 1, 1], [], []>} : vector<8x8xf32>, vector<8x32xf32>, vector<8x32xf32> -> vector<8x32xf32>
    %55 = arith.addf %31, %54 : vector<8x32xf32>
    %c0_28 = arith.constant 0 : index
    %c1 = arith.constant 1 : index
    %c0_29 = arith.constant 0 : index
    %c0_30 = arith.constant 0 : index
    %56 = vector.load %arg8[%c0_28, %c1, %c0_29, %c0_30] : memref<1x4x8x8xf32, #tpu.memory_space<vmem>>, vector<1x1x8x8xf32>
    %57 = vector.shape_cast %56 : vector<1x1x8x8xf32> to vector<8x8xf32>
    %58 = vector.shape_cast %42 : vector<8x8xf32> to vector<1x1x8x8xf32>
    tpu.vector_store %arg8[%c0_28, %c1, %c0_29, %c0_30], %58 {strides = array<i32>} : memref<1x4x8x8xf32, #tpu.memory_space<vmem>>, vector<1x1x8x8xf32>,
    %c0_31 = arith.constant 0 : index
    %c1_32 = arith.constant 1 : index
    %c0_33 = arith.constant 0 : index
    %c0_34 = arith.constant 0 : index
    %59 = vector.load %arg7[%c0_31, %c1_32, %c0_33, %c0_34] : memref<1x4x8x8xf32, #tpu.memory_space<vmem>>, vector<1x1x8x8xf32>
    %60 = vector.shape_cast %59 : vector<1x1x8x8xf32> to vector<8x8xf32>
    %61 = vector.shape_cast %51 : vector<8x8xf32> to vector<1x1x8x8xf32>
    tpu.vector_store %arg7[%c0_31, %c1_32, %c0_33, %c0_34], %61 {strides = array<i32>} : memref<1x4x8x8xf32, #tpu.memory_space<vmem>>, vector<1x1x8x8xf32>,
    %62 = vector.extract_strided_slice %9 {offsets = [0, 16], sizes = [8, 8], strides = [1, 1]} : vector<8x32xf32> to vector<8x8xf32>
    %63 = vector.extract_strided_slice %10 {offsets = [0, 16], sizes = [8, 8], strides = [1, 1]} : vector<8x32xf32> to vector<8x8xf32>
    %64 = vector.extract_strided_slice %11 {offsets = [0, 16], sizes = [8, 8], strides = [1, 1]} : vector<8x32xf32> to vector<8x8xf32>
    %65 = tpu.transpose %63, [1, 0] : vector<8x8xf32> -> vector<8x8xf32>
    %cst_35 = arith.constant dense<0.000000e+00> : vector<8x8xf32>
    %66 = tpu.matmul %62, %65, %cst_35 {dimension_numbers = #tpu.dot_dimension_numbers<[1], [0], [0], [1], [0, 0, 1, 1], [], []>} : vector<8x8xf32>, vector<8x8xf32>, vector<8x8xf32> -> vector<8x8xf32>
    %cst_36 = arith.constant dense<0xFF800000> : vector<8xf32>
    %67 = vector.multi_reduction <maximumf>, %66, %cst_36 [1] : vector<8x8xf32> to vector<8xf32>
    %68 = vector.shape_cast %67 : vector<8xf32> to vector<8x1xf32>
    %69 = vector.broadcast %68 : vector<8x1xf32> to vector<8x8xf32>
    %70 = arith.subf %66, %69 : vector<8x8xf32>
    %71 = math.exp %70 : vector<8x8xf32>
    %cst_37 = arith.constant dense<0.000000e+00> : vector<8xf32>
    %72 = vector.multi_reduction <add>, %71, %cst_37 [1] : vector<8x8xf32> to vector<8xf32>
    %73 = vector.shape_cast %72 : vector<8xf32> to vector<8x1xf32>
    %74 = vector.broadcast %73 : vector<8x1xf32> to vector<8x8xf32>
    %75 = arith.divf %71, %74 : vector<8x8xf32>
    %cst_38 = arith.constant dense<0.000000e+00> : vector<8x8xf32>
    %76 = tpu.matmul %75, %64, %cst_38 {dimension_numbers = #tpu.dot_dimension_numbers<[1], [0], [0], [1], [0, 0, 1, 1], [], []>} : vector<8x8xf32>, vector<8x8xf32>, vector<8x8xf32> -> vector<8x8xf32>
    %77 = vector.extract_strided_slice %12 {offsets = [16, 0], sizes = [8, 32], strides = [1, 1]} : vector<32x32xf32> to vector<8x32xf32>
    %cst_39 = arith.constant dense<0.000000e+00> : vector<8x32xf32>
    %78 = tpu.matmul %76, %77, %cst_39 {dimension_numbers = #tpu.dot_dimension_numbers<[1], [0], [0], [1], [0, 0, 1, 1], [], []>} : vector<8x8xf32>, vector<8x32xf32>, vector<8x32xf32> -> vector<8x32xf32>
    %79 = arith.addf %55, %78 : vector<8x32xf32>
    %c0_40 = arith.constant 0 : index
    %c2 = arith.constant 2 : index
    %c0_41 = arith.constant 0 : index
    %c0_42 = arith.constant 0 : index
    %80 = vector.load %arg8[%c0_40, %c2, %c0_41, %c0_42] : memref<1x4x8x8xf32, #tpu.memory_space<vmem>>, vector<1x1x8x8xf32>
    %81 = vector.shape_cast %80 : vector<1x1x8x8xf32> to vector<8x8xf32>
    %82 = vector.shape_cast %66 : vector<8x8xf32> to vector<1x1x8x8xf32>
    tpu.vector_store %arg8[%c0_40, %c2, %c0_41, %c0_42], %82 {strides = array<i32>} : memref<1x4x8x8xf32, #tpu.memory_space<vmem>>, vector<1x1x8x8xf32>,
    %c0_43 = arith.constant 0 : index
    %c2_44 = arith.constant 2 : index
    %c0_45 = arith.constant 0 : index
    %c0_46 = arith.constant 0 : index
    %83 = vector.load %arg7[%c0_43, %c2_44, %c0_45, %c0_46] : memref<1x4x8x8xf32, #tpu.memory_space<vmem>>, vector<1x1x8x8xf32>
    %84 = vector.shape_cast %83 : vector<1x1x8x8xf32> to vector<8x8xf32>
    %85 = vector.shape_cast %75 : vector<8x8xf32> to vector<1x1x8x8xf32>
    tpu.vector_store %arg7[%c0_43, %c2_44, %c0_45, %c0_46], %85 {strides = array<i32>} : memref<1x4x8x8xf32, #tpu.memory_space<vmem>>, vector<1x1x8x8xf32>,
    %86 = vector.extract_strided_slice %9 {offsets = [0, 24], sizes = [8, 8], strides = [1, 1]} : vector<8x32xf32> to vector<8x8xf32>
    %87 = vector.extract_strided_slice %10 {offsets = [0, 24], sizes = [8, 8], strides = [1, 1]} : vector<8x32xf32> to vector<8x8xf32>
    %88 = vector.extract_strided_slice %11 {offsets = [0, 24], sizes = [8, 8], strides = [1, 1]} : vector<8x32xf32> to vector<8x8xf32>
    %89 = tpu.transpose %87, [1, 0] : vector<8x8xf32> -> vector<8x8xf32>
    %cst_47 = arith.constant dense<0.000000e+00> : vector<8x8xf32>
    %90 = tpu.matmul %86, %89, %cst_47 {dimension_numbers = #tpu.dot_dimension_numbers<[1], [0], [0], [1], [0, 0, 1, 1], [], []>} : vector<8x8xf32>, vector<8x8xf32>, vector<8x8xf32> -> vector<8x8xf32>
    %cst_48 = arith.constant dense<0xFF800000> : vector<8xf32>
    %91 = vector.multi_reduction <maximumf>, %90, %cst_48 [1] : vector<8x8xf32> to vector<8xf32>
    %92 = vector.shape_cast %91 : vector<8xf32> to vector<8x1xf32>
    %93 = vector.broadcast %92 : vector<8x1xf32> to vector<8x8xf32>
    %94 = arith.subf %90, %93 : vector<8x8xf32>
    %95 = math.exp %94 : vector<8x8xf32>
    %cst_49 = arith.constant dense<0.000000e+00> : vector<8xf32>
    %96 = vector.multi_reduction <add>, %95, %cst_49 [1] : vector<8x8xf32> to vector<8xf32>
    %97 = vector.shape_cast %96 : vector<8xf32> to vector<8x1xf32>
    %98 = vector.broadcast %97 : vector<8x1xf32> to vector<8x8xf32>
    %99 = arith.divf %95, %98 : vector<8x8xf32>
    %cst_50 = arith.constant dense<0.000000e+00> : vector<8x8xf32>
    %100 = tpu.matmul %99, %88, %cst_50 {dimension_numbers = #tpu.dot_dimension_numbers<[1], [0], [0], [1], [0, 0, 1, 1], [], []>} : vector<8x8xf32>, vector<8x8xf32>, vector<8x8xf32> -> vector<8x8xf32>
    %101 = vector.extract_strided_slice %12 {offsets = [24, 0], sizes = [8, 32], strides = [1, 1]} : vector<32x32xf32> to vector<8x32xf32>
    %cst_51 = arith.constant dense<0.000000e+00> : vector<8x32xf32>
    %102 = tpu.matmul %100, %101, %cst_51 {dimension_numbers = #tpu.dot_dimension_numbers<[1], [0], [0], [1], [0, 0, 1, 1], [], []>} : vector<8x8xf32>, vector<8x32xf32>, vector<8x32xf32> -> vector<8x32xf32>
    %103 = arith.addf %79, %102 : vector<8x32xf32>
    %c0_52 = arith.constant 0 : index
    %c3 = arith.constant 3 : index
    %c0_53 = arith.constant 0 : index
    %c0_54 = arith.constant 0 : index
    %104 = vector.load %arg8[%c0_52, %c3, %c0_53, %c0_54] : memref<1x4x8x8xf32, #tpu.memory_space<vmem>>, vector<1x1x8x8xf32>
    %105 = vector.shape_cast %104 : vector<1x1x8x8xf32> to vector<8x8xf32>
    %106 = vector.shape_cast %90 : vector<8x8xf32> to vector<1x1x8x8xf32>
    tpu.vector_store %arg8[%c0_52, %c3, %c0_53, %c0_54], %106 {strides = array<i32>} : memref<1x4x8x8xf32, #tpu.memory_space<vmem>>, vector<1x1x8x8xf32>,
    %c0_55 = arith.constant 0 : index
    %c3_56 = arith.constant 3 : index
    %c0_57 = arith.constant 0 : index
    %c0_58 = arith.constant 0 : index
    %107 = vector.load %arg7[%c0_55, %c3_56, %c0_57, %c0_58] : memref<1x4x8x8xf32, #tpu.memory_space<vmem>>, vector<1x1x8x8xf32>
    %108 = vector.shape_cast %107 : vector<1x1x8x8xf32> to vector<8x8xf32>
    %109 = vector.shape_cast %99 : vector<8x8xf32> to vector<1x1x8x8xf32>
    tpu.vector_store %arg7[%c0_55, %c3_56, %c0_57, %c0_58], %109 {strides = array<i32>} : memref<1x4x8x8xf32, #tpu.memory_space<vmem>>, vector<1x1x8x8xf32>,
    %c0_59 = arith.constant 0 : index
    %c0_60 = arith.constant 0 : index
    %110 = vector.load %arg5[%c0_59, %c0_60] : memref<1x32xf32, #tpu.memory_space<vmem>>, vector<1x32xf32>
    %111 = vector.broadcast %110 : vector<1x32xf32> to vector<8x32xf32>
    %112 = arith.addf %103, %111 : vector<8x32xf32>
    %c0_61 = arith.constant 0 : index
    %c0_62 = arith.constant 0 : index
    %c0_63 = arith.constant 0 : index
    %113 = vector.load %arg6[%c0_61, %c0_62, %c0_63] : memref<1x8x32xf32, #tpu.memory_space<vmem>>, vector<1x8x32xf32>
    %114 = vector.shape_cast %113 : vector<1x8x32xf32> to vector<8x32xf32>
    %115 = vector.shape_cast %112 : vector<8x32xf32> to vector<1x8x32xf32>
    tpu.vector_store %arg6[%c0_61, %c0_62, %c0_63], %115 {strides = array<i32>} : memref<1x8x32xf32, #tpu.memory_space<vmem>>, vector<1x8x32xf32>,
    return
  }
  func.func @transform_0(%arg0: i32) -> (i32, i32, i32) {
    %c0_i32 = arith.constant 0 : i32
    %c0_i32_0 = arith.constant 0 : i32
    %c0_i32_1 = arith.constant 0 : i32
    return %arg0, %c0_i32, %c0_i32_0 : i32, i32, i32
  }
  func.func @transform_1(%arg0: i32) -> (i32, i32) {
    %c0_i32 = arith.constant 0 : i32
    %c0_i32_0 = arith.constant 0 : i32
    %c0_i32_1 = arith.constant 0 : i32
    return %c0_i32, %c0_i32_0 : i32, i32
  }
  func.func @transform_2(%arg0: i32) -> (i32, i32) {
    %c0_i32 = arith.constant 0 : i32
    %c0_i32_0 = arith.constant 0 : i32
    %c0_i32_1 = arith.constant 0 : i32
    return %c0_i32, %c0_i32_0 : i32, i32
  }
  func.func @transform_3(%arg0: i32) -> (i32, i32) {
    %c0_i32 = arith.constant 0 : i32
    %c0_i32_0 = arith.constant 0 : i32
    %c0_i32_1 = arith.constant 0 : i32
    return %c0_i32, %c0_i32_0 : i32, i32
  }
  func.func @transform_4(%arg0: i32) -> (i32, i32) {
    %c0_i32 = arith.constant 0 : i32
    %c0_i32_0 = arith.constant 0 : i32
    %c0_i32_1 = arith.constant 0 : i32
    return %c0_i32, %c0_i32_0 : i32, i32
  }
  func.func @transform_5(%arg0: i32) -> (i32, i32, i32) {
    %c0_i32 = arith.constant 0 : i32
    %c0_i32_0 = arith.constant 0 : i32
    %c0_i32_1 = arith.constant 0 : i32
    return %arg0, %c0_i32, %c0_i32_0 : i32, i32, i32
  }
  func.func @transform_6(%arg0: i32) -> (i32, i32, i32, i32) {
    %c0_i32 = arith.constant 0 : i32
    %c0_i32_0 = arith.constant 0 : i32
    %c0_i32_1 = arith.constant 0 : i32
    %c0_i32_2 = arith.constant 0 : i32
    return %arg0, %c0_i32, %c0_i32_0, %c0_i32_1 : i32, i32, i32, i32
  }
  func.func @transform_7(%arg0: i32) -> (i32, i32, i32, i32) {
    %c0_i32 = arith.constant 0 : i32
    %c0_i32_0 = arith.constant 0 : i32
    %c0_i32_1 = arith.constant 0 : i32
    %c0_i32_2 = arith.constant 0 : i32
    return %arg0, %c0_i32, %c0_i32_0, %c0_i32_1 : i32, i32, i32, i32
  }
}

</mosaic_0001>

<llo_original>
// kernel: tpu_custom_call.1
$region0: #{tpu_custom_call.1}
  #allocation0 [shape = 'u32[]', space=smem, size = 0x4, offset = 0x4, fixed_abs, tag = 'smem constant byte address 0x4 - core index']
  #allocation1 [shape = 'u32[144,128]{1,0:T(1,128)}', space=vmem, size = 0x12000, scoped, tag = 'internal scratch']
  %s0 = inlined_call_operand.hbm [shape: f32[2,8,32], index: 0, kind: input, shape index: {}]
  %s1 = inlined_call_operand.hbm [shape: f32[32,96], index: 1, kind: input, shape index: {}]
  %s2 = inlined_call_operand.vmem [shape: f32[1,96], index: 2, kind: input, shape index: {}]
  %s3 = inlined_call_operand.hbm [shape: f32[32,32], index: 3, kind: input, shape index: {}]
  %s4 = inlined_call_operand.vmem [shape: f32[1,32], index: 4, kind: input, shape index: {}]
  %s5 = inlined_call_operand.hbm [shape: f32[2,8,32], index: 5, kind: output, shape index: {0}]
  %s6 = inlined_call_operand.hbm [shape: f32[2,4,8,8], index: 6, kind: output, shape index: {1}]
  %s7 = inlined_call_operand.hbm [shape: f32[2,4,8,8], index: 7, kind: output, shape index: {2}]
  %8 = xla_tuple %s5, %s6, %s7
  %s9 = sld [smem:[#allocation0]]
  $region81: #{tpu_custom_call.1} parent=0
    _
  %s11 = ssub.s32 1, %s9
  %s12 = scalar_select 0, %s11, %s9
  $region1: #{tpu_custom_call.1} parent=0
    #allocation2 [shape = 'u8[8192]{0}', space=vmem, size = 0x2000, scoped, tag = 'input window, operand 0']
    #allocation3 [shape = 's32[2]{0}', space=sflag, size = 0x8, scoped, tag = 'scoped memory for tpu_custom_call.1']
    #allocation4 [shape = 's32[2]{0}', space=sflag, size = 0x8, scoped, tag = 'scoped memory for tpu_custom_call.1']
    #allocation5 [shape = 'u8[16384]{0}', space=vmem, size = 0x4000, scoped, tag = 'input window, operand 1, single buffered']
    #allocation6 [shape = 's32[1]{0}', space=sflag, size = 0x4, scoped, tag = 'scoped memory for tpu_custom_call.1']
    #allocation7 [shape = 'u8[16384]{0}', space=vmem, size = 0x4000, scoped, tag = 'input window, operand 3, single buffered']
    #allocation8 [shape = 'u8[8192]{0}', space=vmem, size = 0x2000, scoped, tag = 'output window, operand 0']
    #allocation9 [shape = 'u8[32768]{0}', space=vmem, size = 0x8000, scoped, tag = 'output window, operand 1']
    #allocation10 [shape = 's32[2]{0}', space=sflag, size = 0x8, scoped, tag = 'scoped memory for tpu_custom_call.1']
    #allocation11 [shape = 'u8[32768]{0}', space=vmem, size = 0x8000, scoped, tag = 'output window, operand 2']
    %13 = vsyncpa [#allocation3], 0
    %s14 = scalar_lea.sflag [#allocation3], 1
    %15 = vsyncpa %s14, 0
    %16 = vsyncpa [#allocation6], 0
    %17 = vsyncpa [#allocation4], 0
    %s18 = scalar_lea.sflag [#allocation4], 1
    %19 = vsyncpa %s18, 0
    %20 = vsyncpa [#allocation10], 0
    %s21 = scalar_lea.sflag [#allocation10], 1
    %22 = vsyncpa %s21, 0
    loop: start=0, step=1, limit=4
    $region2: #{tpu_custom_call.1} parent=1 // loop_pre_header
      _
    $region3: #{tpu_custom_call.1} parent=1 // loop_header
      %s24 = sphi 0, %s28
      %p25 = scmp.ge.s32.totalorder %s24, 4
      %s34 = sphi 0, %s36
      %s37 = sphi 0, %s34
      %s38 = sphi 0, %s37
      %s54 = sphi 0, %s38
      %s58 = sphi 0, %s58
      %s60 = sphi 0, %s58
      %s61 = sphi 0, %s60
      %s75 = sphi 0, %s61
      %s79 = sphi 0, %s79
      %s81 = sphi 0, %s79
      %s82 = sphi 0, %s81
      %s96 = sphi 0, %s82
      %s100 = sphi 0, %s100
      %s102 = sphi 0, %s100
      %s103 = sphi 0, %s102
      %s117 = sphi 0, %s103
      %s121 = sphi 0, %s121
      %s123 = sphi 0, %s121
      %s124 = sphi 0, %s123
      %s138 = sphi 0, %s124
      %s144 = sphi 0, %s146
      %s147 = sphi 0, %s144
      %s148 = sphi 0, %s147
      %s164 = sphi 0, %s148
      %s170 = sphi 0, %s172
      %s173 = sphi 0, %s170
      %s174 = sphi 0, %s173
      %s190 = sphi 0, %s174
      %s196 = sphi 0, %s198
      %s199 = sphi 0, %s196
      %s200 = sphi 0, %s199
      %s216 = sphi 0, %s200
    $region4: #{tpu_custom_call.1} parent=1 // loop_header_branch
      %27 = sbr.rel (%p25) target = $region8
    $region5: #{tpu_custom_call.1} parent=1 // loop_body
      %s29 = ssub.s32 %s24, 1
      %s30 = ssub.s32 %s24, 2
      %s31 = sadd.s32 %s24, 1
      %s32 = ssub.s32 %s24, %s31
      %p33 = scmp.eq.s32.totalorder %s32, 0
      %s35 = sadd.s32 %s34, 1
      %s36 = scalar_select %p33, %s34, %s35
      %p39 = pneg %p33
      %p40 = scmp.eq.s32.totalorder %s24, 1
      %p41 = por %p39, %p40
      %p42 = scmp.ne.s32.totalorder %s34, %s37
      %p43 = scmp.eq.s32.totalorder %s24, 0
      %p44 = por %p42, %p43
      %p45 = scmp.ne.s32.totalorder %s34, %s37
      %p46 = scmp.eq.s32.totalorder %s29, 1
      %p47 = por %p45, %p46
      %p48 = scmp.ne.s32.totalorder %s37, %s38
      %p49 = scmp.eq.s32.totalorder %s29, 0
      %p50 = por %p48, %p49
      %p51 = scmp.ne.s32.totalorder %s37, %s38
      %p52 = scmp.eq.s32.totalorder %s30, 1
      %p53 = por %p51, %p52
      %p55 = scmp.ne.s32.totalorder %s38, %s54
      %p56 = scmp.eq.s32.totalorder %s30, 0
      %p57 = por %p55, %p56
      %s59 = sadd.s32 %s58, 1
      %p62 = scmp.eq.s32.totalorder %s24, 1
      %p63 = scmp.ne.s32.totalorder %s58, %s60
      %p64 = scmp.eq.s32.totalorder %s24, 0
      %p65 = por %p63, %p64
      %p66 = scmp.ne.s32.totalorder %s58, %s60
      %p67 = scmp.eq.s32.totalorder %s29, 1
      %p68 = por %p66, %p67
      %p69 = scmp.ne.s32.totalorder %s60, %s61
      %p70 = scmp.eq.s32.totalorder %s29, 0
      %p71 = por %p69, %p70
      %p72 = scmp.ne.s32.totalorder %s60, %s61
      %p73 = scmp.eq.s32.totalorder %s30, 1
      %p74 = por %p72, %p73
      %p76 = scmp.ne.s32.totalorder %s61, %s75
      %p77 = scmp.eq.s32.totalorder %s30, 0
      %p78 = por %p76, %p77
      %s80 = sadd.s32 %s79, 1
      %p83 = scmp.eq.s32.totalorder %s24, 1
      %p84 = scmp.ne.s32.totalorder %s79, %s81
      %p85 = scmp.eq.s32.totalorder %s24, 0
      %p86 = por %p84, %p85
      %p87 = scmp.ne.s32.totalorder %s79, %s81
      %p88 = scmp.eq.s32.totalorder %s29, 1
      %p89 = por %p87, %p88
      %p90 = scmp.ne.s32.totalorder %s81, %s82
      %p91 = scmp.eq.s32.totalorder %s29, 0
      %p92 = por %p90, %p91
      %p93 = scmp.ne.s32.totalorder %s81, %s82
      %p94 = scmp.eq.s32.totalorder %s30, 1
      %p95 = por %p93, %p94
      %p97 = scmp.ne.s32.totalorder %s82, %s96
      %p98 = scmp.eq.s32.totalorder %s30, 0
      %p99 = por %p97, %p98
      %s101 = sadd.s32 %s100, 1
      %p104 = scmp.eq.s32.totalorder %s24, 1
      %p105 = scmp.ne.s32.totalorder %s100, %s102
      %p106 = scmp.eq.s32.totalorder %s24, 0
      %p107 = por %p105, %p106
      %p108 = scmp.ne.s32.totalorder %s100, %s102
      %p109 = scmp.eq.s32.totalorder %s29, 1
      %p110 = por %p108, %p109
      %p111 = scmp.ne.s32.totalorder %s102, %s103
      %p112 = scmp.eq.s32.totalorder %s29, 0
      %p113 = por %p111, %p112
      %p114 = scmp.ne.s32.totalorder %s102, %s103
      %p115 = scmp.eq.s32.totalorder %s30, 1
      %p116 = por %p114, %p115
      %p118 = scmp.ne.s32.totalorder %s103, %s117
      %p119 = scmp.eq.s32.totalorder %s30, 0
      %p120 = por %p118, %p119
      %s122 = sadd.s32 %s121, 1
      %p125 = scmp.eq.s32.totalorder %s24, 1
      %p126 = scmp.ne.s32.totalorder %s121, %s123
      %p127 = scmp.eq.s32.totalorder %s24, 0
      %p128 = por %p126, %p127
      %p129 = scmp.ne.s32.totalorder %s121, %s123
      %p130 = scmp.eq.s32.totalorder %s29, 1
      %p131 = por %p129, %p130
      %p132 = scmp.ne.s32.totalorder %s123, %s124
      %p133 = scmp.eq.s32.totalorder %s29, 0
      %p134 = por %p132, %p133
      %p135 = scmp.ne.s32.totalorder %s123, %s124
      %p136 = scmp.eq.s32.totalorder %s30, 1
      %p137 = por %p135, %p136
      %p139 = scmp.ne.s32.totalorder %s124, %s138
      %p140 = scmp.eq.s32.totalorder %s30, 0
      %p141 = por %p139, %p140
      %s142 = ssub.s32 %s24, %s31
      %p143 = scmp.eq.s32.totalorder %s142, 0
      %s145 = sadd.s32 %s144, 1
      %s146 = scalar_select %p143, %s144, %s145
      %p149 = pneg %p143
      %p150 = scmp.eq.s32.totalorder %s24, 1
      %p151 = por %p149, %p150
      %p152 = scmp.ne.s32.totalorder %s144, %s147
      %p153 = scmp.eq.s32.totalorder %s24, 0
      %p154 = por %p152, %p153
      %p155 = scmp.ne.s32.totalorder %s144, %s147
      %p156 = scmp.eq.s32.totalorder %s29, 1
      %p157 = por %p155, %p156
      %p158 = scmp.ne.s32.totalorder %s147, %s148
      %p159 = scmp.eq.s32.totalorder %s29, 0
      %p160 = por %p158, %p159
      %p161 = scmp.ne.s32.totalorder %s147, %s148
      %p162 = scmp.eq.s32.totalorder %s30, 1
      %p163 = por %p161, %p162
      %p165 = scmp.ne.s32.totalorder %s148, %s164
      %p166 = scmp.eq.s32.totalorder %s30, 0
      %p167 = por %p165, %p166
      %s168 = ssub.s32 %s24, %s31
      %p169 = scmp.eq.s32.totalorder %s168, 0
      %s171 = sadd.s32 %s170, 1
      %s172 = scalar_select %p169, %s170, %s171
      %p175 = pneg %p169
      %p176 = scmp.eq.s32.totalorder %s24, 1
      %p177 = por %p175, %p176
      %p178 = scmp.ne.s32.totalorder %s170, %s173
      %p179 = scmp.eq.s32.totalorder %s24, 0
      %p180 = por %p178, %p179
      %p181 = scmp.ne.s32.totalorder %s170, %s173
      %p182 = scmp.eq.s32.totalorder %s29, 1
      %p183 = por %p181, %p182
      %p184 = scmp.ne.s32.totalorder %s173, %s174
      %p185 = scmp.eq.s32.totalorder %s29, 0
      %p186 = por %p184, %p185
      %p187 = scmp.ne.s32.totalorder %s173, %s174
      %p188 = scmp.eq.s32.totalorder %s30, 1
      %p189 = por %p187, %p188
      %p191 = scmp.ne.s32.totalorder %s174, %s190
      %p192 = scmp.eq.s32.totalorder %s30, 0
      %p193 = por %p191, %p192
      %s194 = ssub.s32 %s24, %s31
      %p195 = scmp.eq.s32.totalorder %s194, 0
      %s197 = sadd.s32 %s196, 1
      %s198 = scalar_select %p195, %s196, %s197
      %p201 = pneg %p195
      %p202 = scmp.eq.s32.totalorder %s24, 1
      %p203 = por %p201, %p202
      %p204 = scmp.ne.s32.totalorder %s196, %s199
      %p205 = scmp.eq.s32.totalorder %s24, 0
      %p206 = por %p204, %p205
      %p207 = scmp.ne.s32.totalorder %s196, %s199
      %p208 = scmp.eq.s32.totalorder %s29, 1
      %p209 = por %p207, %p208
      %p210 = scmp.ne.s32.totalorder %s199, %s200
      %p211 = scmp.eq.s32.totalorder %s29, 0
      %p212 = por %p210, %p211
      %p213 = scmp.ne.s32.totalorder %s199, %s200
      %p214 = scmp.eq.s32.totalorder %s30, 1
      %p215 = por %p213, %p214
      %p217 = scmp.ne.s32.totalorder %s200, %s216
      %p218 = scmp.eq.s32.totalorder %s30, 0
      %p219 = por %p217, %p218
      %p220 = scmp.le.s32.totalorder 1, %s24
      %p221 = scmp.lt.s32.totalorder %s24, 3
      %p222 = pnand %p220, %p221
      %p223 = pneg %p222
      // Predicated region
      $region9: #{tpu_custom_call.1} parent=5 // pred_check
        _
      $region10: #{tpu_custom_call.1} parent=5 // pred_check_branch
        %225 = sbr.rel (%p222) target = $region12
      $region11: #{tpu_custom_call.1} parent=5 // pred_region
        %s226 = ssub.s32 %s24, 1
        // Predicated region
        $region13: #{tpu_custom_call.1} parent=11 // pred_check
          %p227 = pneg %p71
        $region14: #{tpu_custom_call.1} parent=11 // pred_check_branch
          %229 = sbr.rel (%p227) target = $region16
        $region15: #{tpu_custom_call.1} parent=11 // pred_region
          %s231 = ssub.s32 512, 512
          %232 = vsyncadd [#allocation6], %s231
          %s233 = sshll.u32 [#allocation5], 4
          %s234 = int_to_ptr.vmem [resolvable:$true] %s233
          %239 = dma.hbm_to_vmem [thread:$0]  %s1, 512, %s234, [#allocation6], 128, 128, 8
        $region16: #{tpu_custom_call.1} parent=11 // pred_fallthru
          _
        // Predicated region
        $region17: #{tpu_custom_call.1} parent=11 // pred_check
          %p240 = pneg %p92
        $region18: #{tpu_custom_call.1} parent=11 // pred_check_branch
          %242 = sbr.rel (%p240) target = $region20
        $region19: #{tpu_custom_call.1} parent=11 // pred_region
          _
        $region20: #{tpu_custom_call.1} parent=11 // pred_fallthru
          _
        // Predicated region
        $region21: #{tpu_custom_call.1} parent=11 // pred_check
          %p243 = pneg %p113
        $region22: #{tpu_custom_call.1} parent=11 // pred_check_branch
          %245 = sbr.rel (%p243) target = $region24
        $region23: #{tpu_custom_call.1} parent=11 // pred_region
          %s247 = ssub.s32 512, 512
          %248 = vsyncadd [#allocation6], %s247
          %s249 = sshll.u32 [#allocation7], 4
          %s250 = int_to_ptr.vmem [resolvable:$true] %s249
          %255 = dma.hbm_to_vmem [thread:$0]  %s3, 512, %s250, [#allocation6], 128, 128, 8
        $region24: #{tpu_custom_call.1} parent=11 // pred_fallthru
          _
        // Predicated region
        $region25: #{tpu_custom_call.1} parent=11 // pred_check
          %p256 = pneg %p134
        $region26: #{tpu_custom_call.1} parent=11 // pred_check_branch
          %258 = sbr.rel (%p256) target = $region28
        $region27: #{tpu_custom_call.1} parent=11 // pred_region
          _
        $region28: #{tpu_custom_call.1} parent=11 // pred_fallthru
          _
      $region12: #{tpu_custom_call.1} parent=5 // pred_fallthru
        _
      %p259 = scmp.lt.s32.totalorder %s24, 2
      // Predicated region
      $region29: #{tpu_custom_call.1} parent=5 // pred_check
        %p260 = pneg %p259
      $region30: #{tpu_custom_call.1} parent=5 // pred_check_branch
        %262 = sbr.rel (%p260) target = $region32
      $region31: #{tpu_custom_call.1} parent=5 // pred_region
        // Predicated region
        $region33: #{tpu_custom_call.1} parent=31 // pred_check
          %p263 = pneg %p44
        $region34: #{tpu_custom_call.1} parent=31 // pred_check_branch
          %265 = sbr.rel (%p263) target = $region36
        $region35: #{tpu_custom_call.1} parent=31 // pred_region
          %s266 = sand.u32 %s34, 1
          %s267 = scalar_lea.sflag [#allocation3], %s266
          %s268 = sand.u32 %s34, 1
          %s269 = smul.addr %s268, 8
          %s270 = scalar_lea.vmem [#allocation2], %s269
          %s272 = ssub.s32 128, 128
          %273 = vsyncadd %s267, %s272
          %s274 = smul.addr %s24, 128
          %s275 = scalar_lea.hbm %s0, %s274
          %s277 = sshll.u32 %s270, 4
          %s278 = int_to_ptr.vmem [resolvable:$true] %s277
          %280 = dma.hbm_to_vmem [thread:$0]  %s275, 128, %s278, %s267
        $region36: #{tpu_custom_call.1} parent=31 // pred_fallthru
          _
      $region32: #{tpu_custom_call.1} parent=5 // pred_fallthru
        _
      %p281 = scmp.le.s32.totalorder 1, %s24
      %p282 = scmp.lt.s32.totalorder %s24, 3
      %p283 = pnand %p281, %p282
      %p284 = pneg %p283
      // Predicated region
      $region37: #{tpu_custom_call.1} parent=5 // pred_check
        _
      $region38: #{tpu_custom_call.1} parent=5 // pred_check_branch
        %286 = sbr.rel (%p283) target = $region40
      $region39: #{tpu_custom_call.1} parent=5 // pred_region
        %s287 = ssub.s32 %s24, 1
        %s288 = sand.u32 %s37, 1
        %s289 = scalar_lea.sflag [#allocation3], %s288
        %s290 = sand.u32 %s37, 1
        %s291 = smul.addr %s290, 8
        %s292 = scalar_lea.vmem [#allocation2], %s291
        // Predicated region
        $region41: #{tpu_custom_call.1} parent=39 // pred_check
          %p293 = pneg %p50
        $region42: #{tpu_custom_call.1} parent=39 // pred_check_branch
          %295 = sbr.rel (%p293) target = $region44
        $region43: #{tpu_custom_call.1} parent=39 // pred_region
          %296 = dma.done %s289, 128
        $region44: #{tpu_custom_call.1} parent=39 // pred_fallthru
          _
        // Predicated region
        $region45: #{tpu_custom_call.1} parent=39 // pred_check
          %p297 = pneg %p71
        $region46: #{tpu_custom_call.1} parent=39 // pred_check_branch
          %299 = sbr.rel (%p297) target = $region48
        $region47: #{tpu_custom_call.1} parent=39 // pred_region
          %300 = dma.done [#allocation6], 512
        $region48: #{tpu_custom_call.1} parent=39 // pred_fallthru
          _
        // Predicated region
        $region49: #{tpu_custom_call.1} parent=39 // pred_check
          %p301 = pneg %p113
        $region50: #{tpu_custom_call.1} parent=39 // pred_check_branch
          %303 = sbr.rel (%p301) target = $region52
        $region51: #{tpu_custom_call.1} parent=39 // pred_region
          %304 = dma.done [#allocation6], 512
        $region52: #{tpu_custom_call.1} parent=39 // pred_fallthru
          _
        %s305 = sand.u32 %s37, 1
        %s306 = scalar_lea.sflag [#allocation3], %s305
        %s307 = sand.u32 %s37, 1
        %s308 = smul.addr %s307, 8
        %s309 = scalar_lea.vmem [#allocation2], %s308
        %p310 = pneg %p50
        %p311 = pneg %p47
        %p312 = pneg %p71
        %p313 = pneg %p68
        %p314 = pneg %p92
        %p315 = pneg %p89
        %p316 = pneg %p113
        %p317 = pneg %p110
        %p318 = pneg %p134
        %p319 = pneg %p131
        %p320 = pneg %p160
        %p321 = pneg %p157
        %s322 = sand.u32 %s147, 1
        %s323 = scalar_lea.sflag [#allocation4], %s322
        %s324 = sand.u32 %s147, 1
        %s325 = smul.addr %s324, 8
        %s326 = scalar_lea.vmem [#allocation8], %s325
        %p327 = pneg %p186
        %p328 = pneg %p183
        %s329 = sand.u32 %s29, 1
        %s330 = scalar_lea.sflag [#allocation10], %s329
        %s331 = sand.u32 %s173, 1
        %s332 = smul.addr %s331, 32
        %s333 = scalar_lea.vmem [#allocation9], %s332
        %p334 = pneg %p212
        %p335 = pneg %p209
        %s336 = sand.u32 %s29, 1
        %s337 = scalar_lea.sflag [#allocation10], %s336
        %s338 = sand.u32 %s199, 1
        %s339 = smul.addr %s338, 32
        %s340 = scalar_lea.vmem [#allocation11], %s339
        %v341 = vld [vmem:[%s292] sm:$0xff]
        %v342 = vld [vmem:[#allocation5] sm:$0xff]
        %v343 = vld [vmem:[#allocation5 + $0x8] sm:$0xff]
        %v344 = vld [vmem:[#allocation5 + $0x10] sm:$0xff]
        %v345 = vld [vmem:[#allocation5 + $0x18] sm:$0xff]
        %v346 = vld [vmem:[%s2] sm:$0x1]
        %v348 = vlaneseq
        %v349 = vshrl.u32 %v348, 7
        %v350 = vsub.s32 0, %v349
        %v351 = vrot.slane %v346, %v350
        %vm353 = vcmask 261120
        %v355 = vsel %vm353, %v341, 0
        %357 = vmatprep.subr.mxu0 0.0
        %358 = vmatpush1.msra.mxu0 0.0
        %359 = vmatprep.subr.mxu0 0.0
        %360 = vmatpush1.msra.mxu0 0.0
        %361 = vmatprep.subr.mxu0 0.0
        %362 = vmatpush1.msra.mxu0 0.0
        %363 = vmatprep.subr.mxu0 0.0
        %364 = vmatpush1.msra.mxu0 0.0
        %365 = vmatprep.subr.mxu0 0.0
        %366 = vmatpush1.msra.mxu0 0.0
        %367 = vmatprep.subr.mxu0 0.0
        %368 = vmatpush1.msra.mxu0 0.0
        %369 = vmatprep.subr.mxu0 0.0
        %370 = vmatpush1.msra.mxu0 0.0
        %371 = vmatprep.subr.mxu0 0.0
        %372 = vmatpush1.msra.mxu0 0.0
        %373 = vmatprep.subr.mxu0 0.0
        %374 = vmatpush1.msra.mxu0 0.0
        %375 = vmatprep.subr.mxu0 0.0
        %376 = vmatpush1.msra.mxu0 0.0
        %377 = vmatprep.subr.mxu0 0.0
        %378 = vmatpush1.msra.mxu0 0.0
        %379 = vmatprep.subr.mxu0 0.0
        %380 = vmatpush1.msra.mxu0 0.0
        %381 = vmatprep.subr.mxu0 0.0
        %382 = vmatpush1.msra.mxu0 %v345
        %383 = vmatprep.subr.mxu0 0.0
        %384 = vmatpush1.msra.mxu0 %v344
        %385 = vmatprep.subr.mxu0 0.0
        %386 = vmatpush1.msra.mxu0 %v343
        %387 = vmatprep.subr.mxu0 0.0
        %388 = vmatpush1.msra.mxu0 %v342
        %389 = vmatprep.subr.mxu0 0.0
        %390 = vmatpush2.msra.mxu0 0.0
        %391 = vmatprep.subr.mxu0 0.0
        %392 = vmatpush2.msra.mxu0 0.0
        %393 = vmatprep.subr.mxu0 0.0
        %394 = vmatpush2.msra.mxu0 0.0
        %395 = vmatprep.subr.mxu0 0.0
        %396 = vmatpush2.msra.mxu0 0.0
        %397 = vmatprep.subr.mxu0 0.0
        %398 = vmatpush2.msra.mxu0 0.0
        %399 = vmatprep.subr.mxu0 0.0
        %400 = vmatpush2.msra.mxu0 0.0
        %401 = vmatprep.subr.mxu0 0.0
        %402 = vmatpush2.msra.mxu0 0.0
        %403 = vmatprep.subr.mxu0 0.0
        %404 = vmatpush2.msra.mxu0 0.0
        %405 = vmatprep.subr.mxu0 0.0
        %406 = vmatpush2.msra.mxu0 0.0
        %407 = vmatprep.subr.mxu0 0.0
        %408 = vmatpush2.msra.mxu0 0.0
        %409 = vmatprep.subr.mxu0 0.0
        %410 = vmatpush2.msra.mxu0 0.0
        %411 = vmatprep.subr.mxu0 0.0
        %412 = vmatpush2.msra.mxu0 0.0
        %413 = vmatprep.subr.mxu0 0.0
        %414 = vmatpush2.msra.mxu0 0.0
        %415 = vmatprep.subr.mxu0 0.0
        %416 = vmatpush2.msra.mxu0 0.0
        %417 = vmatprep.subr.mxu0 0.0
        %418 = vmatpush2.msra.mxu0 0.0
        %419 = vmatprep.subr.mxu0 0.0
        %420 = vmatpush2.msra.mxu0 0.0
        %421 = vmatprep.mubr.f32.mxu0 0.0
        %422 = vmatmul.mubr.f32.gmra.mxu0 %v355
        %v423 = vpop.f32.mrf.mxu0
        %v424 = vadd.f32 %v351, %v423
        %v425 = vpop.f32.mrf.mxu0
        %426 = vdwg.mxu0
        %v427 = vmul.f32 %v424, 0.35355338
        %v428 = vld [vmem:[#allocation7] sm:$0xff]
        %v429 = vld [vmem:[#allocation7 + $0x8] sm:$0xff]
        %v430 = vld [vmem:[#allocation7 + $0x10] sm:$0xff]
        %v431 = vld [vmem:[#allocation7 + $0x18] sm:$0xff]
        %433 = vrot.lane.b32.xlu0 %v424, 96
        %v434 = vpop.permute.xlu0 %433
        %vm435 = vcmask 64512
        %v437 = vsel %vm435, %v427, 0
        %v439 = vsel %vm435, %v434, 0
        %441 = vmatprep.subr.mxu0 0.0
        %442 = vmatpush1.xpose.msra.mxu0 0.0
        %443 = vmatprep.subr.mxu0 0.0
        %444 = vmatpush1.xpose.msra.mxu0 0.0
        %445 = vmatprep.subr.mxu0 0.0
        %446 = vmatpush1.xpose.msra.mxu0 0.0
        %447 = vmatprep.subr.mxu0 0.0
        %448 = vmatpush1.xpose.msra.mxu0 0.0
        %449 = vmatprep.subr.mxu0 0.0
        %450 = vmatpush1.xpose.msra.mxu0 0.0
        %451 = vmatprep.subr.mxu0 0.0
        %452 = vmatpush1.xpose.msra.mxu0 0.0
        %453 = vmatprep.subr.mxu0 0.0
        %454 = vmatpush1.xpose.msra.mxu0 0.0
        %455 = vmatprep.subr.mxu0 0.0
        %456 = vmatpush1.xpose.msra.mxu0 0.0
        %457 = vmatprep.subr.mxu0 0.0
        %458 = vmatpush1.xpose.msra.mxu0 0.0
        %459 = vmatprep.subr.mxu0 0.0
        %460 = vmatpush1.xpose.msra.mxu0 0.0
        %461 = vmatprep.subr.mxu0 0.0
        %462 = vmatpush1.xpose.msra.mxu0 0.0
        %463 = vmatprep.subr.mxu0 0.0
        %464 = vmatpush1.xpose.msra.mxu0 0.0
        %465 = vmatprep.subr.mxu0 0.0
        %466 = vmatpush1.xpose.msra.mxu0 0.0
        %467 = vmatprep.subr.mxu0 0.0
        %468 = vmatpush1.xpose.msra.mxu0 0.0
        %469 = vmatprep.subr.mxu0 0.0
        %470 = vmatpush1.xpose.msra.mxu0 0.0
        %471 = vmatprep.subr.mxu0 0.0
        %472 = vmatpush1.xpose.msra.mxu0 %v439
        %473 = vmatprep.subr.mxu0 0.0
        %474 = vmatpush2.xpose.msra.mxu0 0.0
        %475 = vmatprep.subr.mxu0 0.0
        %476 = vmatpush2.xpose.msra.mxu0 0.0
        %477 = vmatprep.subr.mxu0 0.0
        %478 = vmatpush2.xpose.msra.mxu0 0.0
        %479 = vmatprep.subr.mxu0 0.0
        %480 = vmatpush2.xpose.msra.mxu0 0.0
        %481 = vmatprep.subr.mxu0 0.0
        %482 = vmatpush2.xpose.msra.mxu0 0.0
        %483 = vmatprep.subr.mxu0 0.0
        %484 = vmatpush2.xpose.msra.mxu0 0.0
        %485 = vmatprep.subr.mxu0 0.0
        %486 = vmatpush2.xpose.msra.mxu0 0.0
        %487 = vmatprep.subr.mxu0 0.0
        %488 = vmatpush2.xpose.msra.mxu0 0.0
        %489 = vmatprep.subr.mxu0 0.0
        %490 = vmatpush2.xpose.msra.mxu0 0.0
        %491 = vmatprep.subr.mxu0 0.0
        %492 = vmatpush2.xpose.msra.mxu0 0.0
        %493 = vmatprep.subr.mxu0 0.0
        %494 = vmatpush2.xpose.msra.mxu0 0.0
        %495 = vmatprep.subr.mxu0 0.0
        %496 = vmatpush2.xpose.msra.mxu0 0.0
        %497 = vmatprep.subr.mxu0 0.0
        %498 = vmatpush2.xpose.msra.mxu0 0.0
        %499 = vmatprep.subr.mxu0 0.0
        %500 = vmatpush2.xpose.msra.mxu0 0.0
        %501 = vmatprep.subr.mxu0 0.0
        %502 = vmatpush2.xpose.msra.mxu0 0.0
        %503 = vmatprep.subr.mxu0 0.0
        %504 = vmatpush2.xpose.msra.mxu0 0.0
        %505 = vmatprep.mubr.f32.mxu0 0.0
        %506 = vmatmul.mubr.f32.gmra.mxu0 %v437
        %v507 = vpop.f32.mrf.mxu0
        %v508 = vadd.f32 0.0, %v507
        %v509 = vpop.f32.mrf.mxu0
        %510 = vdwg.mxu0
        %v511 = vsel %vm435, %v508, -inf
        %512 = vmax.xlane.f32.xlu0 %v511
        %v513 = vpop.xlane.xlu0 %512
        %v514 = vsub.f32 %v508, %v513
        %v515 = vmul.f32 %v514, 1.442695
        %v516 = vpow.pop %v515
        %v517 = vsel %vm435, %v516, 0.0
        %518 = vadd.xlane.f32.xlu0 %v517
        %v519 = vpop.xlane.xlu0 %518
        %v520 = vrcp.pop %v519
        %v521 = vmul.f32 %v516, %v520
        %522 = vrot.lane.b32.xlu0 %v424, 64
        %v523 = vpop.permute.xlu0 %522
        %v526 = vsel %vm435, %v521, 0
        %528 = vmatprep.subr.mxu0 0.0
        %529 = vmatpush1.msra.mxu0 0.0
        %530 = vmatprep.subr.mxu0 0.0
        %531 = vmatpush1.msra.mxu0 0.0
        %532 = vmatprep.subr.mxu0 0.0
        %533 = vmatpush1.msra.mxu0 0.0
        %534 = vmatprep.subr.mxu0 0.0
        %535 = vmatpush1.msra.mxu0 0.0
        %536 = vmatprep.subr.mxu0 0.0
        %537 = vmatpush1.msra.mxu0 0.0
        %538 = vmatprep.subr.mxu0 0.0
        %539 = vmatpush1.msra.mxu0 0.0
        %540 = vmatprep.subr.mxu0 0.0
        %541 = vmatpush1.msra.mxu0 0.0
        %542 = vmatprep.subr.mxu0 0.0
        %543 = vmatpush1.msra.mxu0 0.0
        %544 = vmatprep.subr.mxu0 0.0
        %545 = vmatpush1.msra.mxu0 0.0
        %546 = vmatprep.subr.mxu0 0.0
        %547 = vmatpush1.msra.mxu0 0.0
        %548 = vmatprep.subr.mxu0 0.0
        %549 = vmatpush1.msra.mxu0 0.0
        %550 = vmatprep.subr.mxu0 0.0
        %551 = vmatpush1.msra.mxu0 0.0
        %552 = vmatprep.subr.mxu0 0.0
        %553 = vmatpush1.msra.mxu0 0.0
        %554 = vmatprep.subr.mxu0 0.0
        %555 = vmatpush1.msra.mxu0 0.0
        %556 = vmatprep.subr.mxu0 0.0
        %557 = vmatpush1.msra.mxu0 0.0
        %558 = vmatprep.subr.mxu0 0.0
        %559 = vmatpush1.msra.mxu0 %v523
        %560 = vmatprep.subr.mxu0 0.0
        %561 = vmatpush2.msra.mxu0 0.0
        %562 = vmatprep.subr.mxu0 0.0
        %563 = vmatpush2.msra.mxu0 0.0
        %564 = vmatprep.subr.mxu0 0.0
        %565 = vmatpush2.msra.mxu0 0.0
        %566 = vmatprep.subr.mxu0 0.0
        %567 = vmatpush2.msra.mxu0 0.0
        %568 = vmatprep.subr.mxu0 0.0
        %569 = vmatpush2.msra.mxu0 0.0
        %570 = vmatprep.subr.mxu0 0.0
        %571 = vmatpush2.msra.mxu0 0.0
        %572 = vmatprep.subr.mxu0 0.0
        %573 = vmatpush2.msra.mxu0 0.0
        %574 = vmatprep.subr.mxu0 0.0
        %575 = vmatpush2.msra.mxu0 0.0
        %576 = vmatprep.subr.mxu0 0.0
        %577 = vmatpush2.msra.mxu0 0.0
        %578 = vmatprep.subr.mxu0 0.0
        %579 = vmatpush2.msra.mxu0 0.0
        %580 = vmatprep.subr.mxu0 0.0
        %581 = vmatpush2.msra.mxu0 0.0
        %582 = vmatprep.subr.mxu0 0.0
        %583 = vmatpush2.msra.mxu0 0.0
        %584 = vmatprep.subr.mxu0 0.0
        %585 = vmatpush2.msra.mxu0 0.0
        %586 = vmatprep.subr.mxu0 0.0
        %587 = vmatpush2.msra.mxu0 0.0
        %588 = vmatprep.subr.mxu0 0.0
        %589 = vmatpush2.msra.mxu0 0.0
        %590 = vmatprep.subr.mxu0 0.0
        %591 = vmatpush2.msra.mxu0 0.0
        %592 = vmatprep.mubr.f32.mxu0 0.0
        %593 = vmatmul.mubr.f32.gmra.mxu0 %v526
        %v594 = vpop.f32.mrf.mxu0
        %v595 = vadd.f32 0.0, %v594
        %v596 = vpop.f32.mrf.mxu0
        %597 = vdwg.mxu0
        %598 = vst.msk [vmem:[%s340] sm:$0xff] %vm435, %v508
        %599 = vst.msk [vmem:[%s333] sm:$0xff] %vm435, %v521
        %600 = vrot.lane.b32.xlu0 %v427, 120
        %v601 = vpop.permute.xlu0 %600
        %602 = vrot.lane.b32.xlu0 %v424, 88
        %v603 = vpop.permute.xlu0 %602
        %v604 = vsel %vm435, %v601, 0
        %v606 = vsel %vm435, %v603, 0
        %608 = vmatprep.subr.mxu0 0.0
        %609 = vmatpush1.xpose.msra.mxu0 0.0
        %610 = vmatprep.subr.mxu0 0.0
        %611 = vmatpush1.xpose.msra.mxu0 0.0
        %612 = vmatprep.subr.mxu0 0.0
        %613 = vmatpush1.xpose.msra.mxu0 0.0
        %614 = vmatprep.subr.mxu0 0.0
        %615 = vmatpush1.xpose.msra.mxu0 0.0
        %616 = vmatprep.subr.mxu0 0.0
        %617 = vmatpush1.xpose.msra.mxu0 0.0
        %618 = vmatprep.subr.mxu0 0.0
        %619 = vmatpush1.xpose.msra.mxu0 0.0
        %620 = vmatprep.subr.mxu0 0.0
        %621 = vmatpush1.xpose.msra.mxu0 0.0
        %622 = vmatprep.subr.mxu0 0.0
        %623 = vmatpush1.xpose.msra.mxu0 0.0
        %624 = vmatprep.subr.mxu0 0.0
        %625 = vmatpush1.xpose.msra.mxu0 0.0
        %626 = vmatprep.subr.mxu0 0.0
        %627 = vmatpush1.xpose.msra.mxu0 0.0
        %628 = vmatprep.subr.mxu0 0.0
        %629 = vmatpush1.xpose.msra.mxu0 0.0
        %630 = vmatprep.subr.mxu0 0.0
        %631 = vmatpush1.xpose.msra.mxu0 0.0
        %632 = vmatprep.subr.mxu0 0.0
        %633 = vmatpush1.xpose.msra.mxu0 0.0
        %634 = vmatprep.subr.mxu0 0.0
        %635 = vmatpush1.xpose.msra.mxu0 0.0
        %636 = vmatprep.subr.mxu0 0.0
        %637 = vmatpush1.xpose.msra.mxu0 0.0
        %638 = vmatprep.subr.mxu0 0.0
        %639 = vmatpush1.xpose.msra.mxu0 %v606
        %640 = vmatprep.subr.mxu0 0.0
        %641 = vmatpush2.xpose.msra.mxu0 0.0
        %642 = vmatprep.subr.mxu0 0.0
        %643 = vmatpush2.xpose.msra.mxu0 0.0
        %644 = vmatprep.subr.mxu0 0.0
        %645 = vmatpush2.xpose.msra.mxu0 0.0
        %646 = vmatprep.subr.mxu0 0.0
        %647 = vmatpush2.xpose.msra.mxu0 0.0
        %648 = vmatprep.subr.mxu0 0.0
        %649 = vmatpush2.xpose.msra.mxu0 0.0
        %650 = vmatprep.subr.mxu0 0.0
        %651 = vmatpush2.xpose.msra.mxu0 0.0
        %652 = vmatprep.subr.mxu0 0.0
        %653 = vmatpush2.xpose.msra.mxu0 0.0
        %654 = vmatprep.subr.mxu0 0.0
        %655 = vmatpush2.xpose.msra.mxu0 0.0
        %656 = vmatprep.subr.mxu0 0.0
        %657 = vmatpush2.xpose.msra.mxu0 0.0
        %658 = vmatprep.subr.mxu0 0.0
        %659 = vmatpush2.xpose.msra.mxu0 0.0
        %660 = vmatprep.subr.mxu0 0.0
        %661 = vmatpush2.xpose.msra.mxu0 0.0
        %662 = vmatprep.subr.mxu0 0.0
        %663 = vmatpush2.xpose.msra.mxu0 0.0
        %664 = vmatprep.subr.mxu0 0.0
        %665 = vmatpush2.xpose.msra.mxu0 0.0
        %666 = vmatprep.subr.mxu0 0.0
        %667 = vmatpush2.xpose.msra.mxu0 0.0
        %668 = vmatprep.subr.mxu0 0.0
        %669 = vmatpush2.xpose.msra.mxu0 0.0
        %670 = vmatprep.subr.mxu0 0.0
        %671 = vmatpush2.xpose.msra.mxu0 0.0
        %672 = vmatprep.mubr.f32.mxu0 0.0
        %673 = vmatmul.mubr.f32.gmra.mxu0 %v604
        %v674 = vpop.f32.mrf.mxu0
        %v675 = vadd.f32 0.0, %v674
        %v676 = vpop.f32.mrf.mxu0
        %677 = vdwg.mxu0
        %v678 = vsel %vm435, %v675, -inf
        %679 = vmax.xlane.f32.xlu0 %v678
        %v680 = vpop.xlane.xlu0 %679
        %v681 = vsub.f32 %v675, %v680
        %v682 = vmul.f32 %v681, 1.442695
        %v683 = vpow.pop %v682
        %v684 = vsel %vm435, %v683, 0.0
        %685 = vadd.xlane.f32.xlu0 %v684
        %v686 = vpop.xlane.xlu0 %685
        %v687 = vrcp.pop %v686
        %v688 = vmul.f32 %v683, %v687
        %689 = vrot.lane.b32.xlu0 %v424, 56
        %v690 = vpop.permute.xlu0 %689
        %v693 = vsel %vm435, %v688, 0
        %695 = vmatprep.subr.mxu0 0.0
        %696 = vmatpush1.msra.mxu0 0.0
        %697 = vmatprep.subr.mxu0 0.0
        %698 = vmatpush1.msra.mxu0 0.0
        %699 = vmatprep.subr.mxu0 0.0
        %700 = vmatpush1.msra.mxu0 0.0
        %701 = vmatprep.subr.mxu0 0.0
        %702 = vmatpush1.msra.mxu0 0.0
        %703 = vmatprep.subr.mxu0 0.0
        %704 = vmatpush1.msra.mxu0 0.0
        %705 = vmatprep.subr.mxu0 0.0
        %706 = vmatpush1.msra.mxu0 0.0
        %707 = vmatprep.subr.mxu0 0.0
        %708 = vmatpush1.msra.mxu0 0.0
        %709 = vmatprep.subr.mxu0 0.0
        %710 = vmatpush1.msra.mxu0 0.0
        %711 = vmatprep.subr.mxu0 0.0
        %712 = vmatpush1.msra.mxu0 0.0
        %713 = vmatprep.subr.mxu0 0.0
        %714 = vmatpush1.msra.mxu0 0.0
        %715 = vmatprep.subr.mxu0 0.0
        %716 = vmatpush1.msra.mxu0 0.0
        %717 = vmatprep.subr.mxu0 0.0
        %718 = vmatpush1.msra.mxu0 0.0
        %719 = vmatprep.subr.mxu0 0.0
        %720 = vmatpush1.msra.mxu0 0.0
        %721 = vmatprep.subr.mxu0 0.0
        %722 = vmatpush1.msra.mxu0 0.0
        %723 = vmatprep.subr.mxu0 0.0
        %724 = vmatpush1.msra.mxu0 0.0
        %725 = vmatprep.subr.mxu0 0.0
        %726 = vmatpush1.msra.mxu0 %v690
        %727 = vmatprep.subr.mxu0 0.0
        %728 = vmatpush2.msra.mxu0 0.0
        %729 = vmatprep.subr.mxu0 0.0
        %730 = vmatpush2.msra.mxu0 0.0
        %731 = vmatprep.subr.mxu0 0.0
        %732 = vmatpush2.msra.mxu0 0.0
        %733 = vmatprep.subr.mxu0 0.0
        %734 = vmatpush2.msra.mxu0 0.0
        %735 = vmatprep.subr.mxu0 0.0
        %736 = vmatpush2.msra.mxu0 0.0
        %737 = vmatprep.subr.mxu0 0.0
        %738 = vmatpush2.msra.mxu0 0.0
        %739 = vmatprep.subr.mxu0 0.0
        %740 = vmatpush2.msra.mxu0 0.0
        %741 = vmatprep.subr.mxu0 0.0
        %742 = vmatpush2.msra.mxu0 0.0
        %743 = vmatprep.subr.mxu0 0.0
        %744 = vmatpush2.msra.mxu0 0.0
        %745 = vmatprep.subr.mxu0 0.0
        %746 = vmatpush2.msra.mxu0 0.0
        %747 = vmatprep.subr.mxu0 0.0
        %748 = vmatpush2.msra.mxu0 0.0
        %749 = vmatprep.subr.mxu0 0.0
        %750 = vmatpush2.msra.mxu0 0.0
        %751 = vmatprep.subr.mxu0 0.0
        %752 = vmatpush2.msra.mxu0 0.0
        %753 = vmatprep.subr.mxu0 0.0
        %754 = vmatpush2.msra.mxu0 0.0
        %755 = vmatprep.subr.mxu0 0.0
        %756 = vmatpush2.msra.mxu0 0.0
        %757 = vmatprep.subr.mxu0 0.0
        %758 = vmatpush2.msra.mxu0 0.0
        %759 = vmatprep.mubr.f32.mxu0 0.0
        %760 = vmatmul.mubr.f32.gmra.mxu0 %v693
        %v761 = vpop.f32.mrf.mxu0
        %v762 = vadd.f32 0.0, %v761
        %v763 = vpop.f32.mrf.mxu0
        %764 = vdwg.mxu0
        %v766 = vsel %vm435, %v762, 0
        %768 = vmatprep.subr.mxu0 0.0
        %769 = vmatpush1.msra.mxu0 0.0
        %770 = vmatprep.subr.mxu0 0.0
        %771 = vmatpush1.msra.mxu0 0.0
        %772 = vmatprep.subr.mxu0 0.0
        %773 = vmatpush1.msra.mxu0 0.0
        %774 = vmatprep.subr.mxu0 0.0
        %775 = vmatpush1.msra.mxu0 0.0
        %776 = vmatprep.subr.mxu0 0.0
        %777 = vmatpush1.msra.mxu0 0.0
        %778 = vmatprep.subr.mxu0 0.0
        %779 = vmatpush1.msra.mxu0 0.0
        %780 = vmatprep.subr.mxu0 0.0
        %781 = vmatpush1.msra.mxu0 0.0
        %782 = vmatprep.subr.mxu0 0.0
        %783 = vmatpush1.msra.mxu0 0.0
        %784 = vmatprep.subr.mxu0 0.0
        %785 = vmatpush1.msra.mxu0 0.0
        %786 = vmatprep.subr.mxu0 0.0
        %787 = vmatpush1.msra.mxu0 0.0
        %788 = vmatprep.subr.mxu0 0.0
        %789 = vmatpush1.msra.mxu0 0.0
        %790 = vmatprep.subr.mxu0 0.0
        %791 = vmatpush1.msra.mxu0 0.0
        %792 = vmatprep.subr.mxu0 0.0
        %793 = vmatpush1.msra.mxu0 0.0
        %794 = vmatprep.subr.mxu0 0.0
        %795 = vmatpush1.msra.mxu0 0.0
        %796 = vmatprep.subr.mxu0 0.0
        %797 = vmatpush1.msra.mxu0 0.0
        %798 = vmatprep.subr.mxu0 0.0
        %799 = vmatpush1.msra.mxu0 %v429
        %800 = vmatprep.subr.mxu0 0.0
        %801 = vmatpush2.msra.mxu0 0.0
        %802 = vmatprep.subr.mxu0 0.0
        %803 = vmatpush2.msra.mxu0 0.0
        %804 = vmatprep.subr.mxu0 0.0
        %805 = vmatpush2.msra.mxu0 0.0
        %806 = vmatprep.subr.mxu0 0.0
        %807 = vmatpush2.msra.mxu0 0.0
        %808 = vmatprep.subr.mxu0 0.0
        %809 = vmatpush2.msra.mxu0 0.0
        %810 = vmatprep.subr.mxu0 0.0
        %811 = vmatpush2.msra.mxu0 0.0
        %812 = vmatprep.subr.mxu0 0.0
        %813 = vmatpush2.msra.mxu0 0.0
        %814 = vmatprep.subr.mxu0 0.0
        %815 = vmatpush2.msra.mxu0 0.0
        %816 = vmatprep.subr.mxu0 0.0
        %817 = vmatpush2.msra.mxu0 0.0
        %818 = vmatprep.subr.mxu0 0.0
        %819 = vmatpush2.msra.mxu0 0.0
        %820 = vmatprep.subr.mxu0 0.0
        %821 = vmatpush2.msra.mxu0 0.0
        %822 = vmatprep.subr.mxu0 0.0
        %823 = vmatpush2.msra.mxu0 0.0
        %824 = vmatprep.subr.mxu0 0.0
        %825 = vmatpush2.msra.mxu0 0.0
        %826 = vmatprep.subr.mxu0 0.0
        %827 = vmatpush2.msra.mxu0 0.0
        %828 = vmatprep.subr.mxu0 0.0
        %829 = vmatpush2.msra.mxu0 0.0
        %830 = vmatprep.subr.mxu0 0.0
        %831 = vmatpush2.msra.mxu0 0.0
        %832 = vmatprep.mubr.f32.mxu0 0.0
        %833 = vmatmul.mubr.f32.gmra.mxu0 %v766
        %v834 = vpop.f32.mrf.mxu0
        %v835 = vadd.f32 0.0, %v834
        %v836 = vpop.f32.mrf.mxu0
        %837 = vdwg.mxu0
        %v839 = vsel %vm435, %v595, 0
        %841 = vmatprep.subr.mxu0 0.0
        %842 = vmatpush1.msra.mxu0 0.0
        %843 = vmatprep.subr.mxu0 0.0
        %844 = vmatpush1.msra.mxu0 0.0
        %845 = vmatprep.subr.mxu0 0.0
        %846 = vmatpush1.msra.mxu0 0.0
        %847 = vmatprep.subr.mxu0 0.0
        %848 = vmatpush1.msra.mxu0 0.0
        %849 = vmatprep.subr.mxu0 0.0
        %850 = vmatpush1.msra.mxu0 0.0
        %851 = vmatprep.subr.mxu0 0.0
        %852 = vmatpush1.msra.mxu0 0.0
        %853 = vmatprep.subr.mxu0 0.0
        %854 = vmatpush1.msra.mxu0 0.0
        %855 = vmatprep.subr.mxu0 0.0
        %856 = vmatpush1.msra.mxu0 0.0
        %857 = vmatprep.subr.mxu0 0.0
        %858 = vmatpush1.msra.mxu0 0.0
        %859 = vmatprep.subr.mxu0 0.0
        %860 = vmatpush1.msra.mxu0 0.0
        %861 = vmatprep.subr.mxu0 0.0
        %862 = vmatpush1.msra.mxu0 0.0
        %863 = vmatprep.subr.mxu0 0.0
        %864 = vmatpush1.msra.mxu0 0.0
        %865 = vmatprep.subr.mxu0 0.0
        %866 = vmatpush1.msra.mxu0 0.0
        %867 = vmatprep.subr.mxu0 0.0
        %868 = vmatpush1.msra.mxu0 0.0
        %869 = vmatprep.subr.mxu0 0.0
        %870 = vmatpush1.msra.mxu0 0.0
        %871 = vmatprep.subr.mxu0 0.0
        %872 = vmatpush1.msra.mxu0 %v428
        %873 = vmatprep.subr.mxu0 0.0
        %874 = vmatpush2.msra.mxu0 0.0
        %875 = vmatprep.subr.mxu0 0.0
        %876 = vmatpush2.msra.mxu0 0.0
        %877 = vmatprep.subr.mxu0 0.0
        %878 = vmatpush2.msra.mxu0 0.0
        %879 = vmatprep.subr.mxu0 0.0
        %880 = vmatpush2.msra.mxu0 0.0
        %881 = vmatprep.subr.mxu0 0.0
        %882 = vmatpush2.msra.mxu0 0.0
        %883 = vmatprep.subr.mxu0 0.0
        %884 = vmatpush2.msra.mxu0 0.0
        %885 = vmatprep.subr.mxu0 0.0
        %886 = vmatpush2.msra.mxu0 0.0
        %887 = vmatprep.subr.mxu0 0.0
        %888 = vmatpush2.msra.mxu0 0.0
        %889 = vmatprep.subr.mxu0 0.0
        %890 = vmatpush2.msra.mxu0 0.0
        %891 = vmatprep.subr.mxu0 0.0
        %892 = vmatpush2.msra.mxu0 0.0
        %893 = vmatprep.subr.mxu0 0.0
        %894 = vmatpush2.msra.mxu0 0.0
        %895 = vmatprep.subr.mxu0 0.0
        %896 = vmatpush2.msra.mxu0 0.0
        %897 = vmatprep.subr.mxu0 0.0
        %898 = vmatpush2.msra.mxu0 0.0
        %899 = vmatprep.subr.mxu0 0.0
        %900 = vmatpush2.msra.mxu0 0.0
        %901 = vmatprep.subr.mxu0 0.0
        %902 = vmatpush2.msra.mxu0 0.0
        %903 = vmatprep.subr.mxu0 0.0
        %904 = vmatpush2.msra.mxu0 0.0
        %905 = vmatprep.mubr.f32.mxu0 0.0
        %906 = vmatmul.mubr.f32.gmra.mxu0 %v839
        %v907 = vpop.f32.mrf.mxu0
        %v908 = vadd.f32 %v835, %v907
        %v909 = vpop.f32.mrf.mxu0
        %910 = vdwg.mxu0
        %s911 = scalar_lea.vmem %s340, 8 [#allocation11]
        %912 = vst.msk [vmem:[%s911] sm:$0xff] %vm435, %v675
        %s913 = scalar_lea.vmem %s333, 8 [#allocation9]
        %914 = vst.msk [vmem:[%s913] sm:$0xff] %vm435, %v688
        %915 = vrot.lane.b32.xlu0 %v427, 112
        %v916 = vpop.permute.xlu0 %915
        %917 = vrot.lane.b32.xlu0 %v424, 80
        %v918 = vpop.permute.xlu0 %917
        %v919 = vsel %vm435, %v916, 0
        %v921 = vsel %vm435, %v918, 0
        %923 = vmatprep.subr.mxu0 0.0
        %924 = vmatpush1.xpose.msra.mxu0 0.0
        %925 = vmatprep.subr.mxu0 0.0
        %926 = vmatpush1.xpose.msra.mxu0 0.0
        %927 = vmatprep.subr.mxu0 0.0
        %928 = vmatpush1.xpose.msra.mxu0 0.0
        %929 = vmatprep.subr.mxu0 0.0
        %930 = vmatpush1.xpose.msra.mxu0 0.0
        %931 = vmatprep.subr.mxu0 0.0
        %932 = vmatpush1.xpose.msra.mxu0 0.0
        %933 = vmatprep.subr.mxu0 0.0
        %934 = vmatpush1.xpose.msra.mxu0 0.0
        %935 = vmatprep.subr.mxu0 0.0
        %936 = vmatpush1.xpose.msra.mxu0 0.0
        %937 = vmatprep.subr.mxu0 0.0
        %938 = vmatpush1.xpose.msra.mxu0 0.0
        %939 = vmatprep.subr.mxu0 0.0
        %940 = vmatpush1.xpose.msra.mxu0 0.0
        %941 = vmatprep.subr.mxu0 0.0
        %942 = vmatpush1.xpose.msra.mxu0 0.0
        %943 = vmatprep.subr.mxu0 0.0
        %944 = vmatpush1.xpose.msra.mxu0 0.0
        %945 = vmatprep.subr.mxu0 0.0
        %946 = vmatpush1.xpose.msra.mxu0 0.0
        %947 = vmatprep.subr.mxu0 0.0
        %948 = vmatpush1.xpose.msra.mxu0 0.0
        %949 = vmatprep.subr.mxu0 0.0
        %950 = vmatpush1.xpose.msra.mxu0 0.0
        %951 = vmatprep.subr.mxu0 0.0
        %952 = vmatpush1.xpose.msra.mxu0 0.0
        %953 = vmatprep.subr.mxu0 0.0
        %954 = vmatpush1.xpose.msra.mxu0 %v921
        %955 = vmatprep.subr.mxu0 0.0
        %956 = vmatpush2.xpose.msra.mxu0 0.0
        %957 = vmatprep.subr.mxu0 0.0
        %958 = vmatpush2.xpose.msra.mxu0 0.0
        %959 = vmatprep.subr.mxu0 0.0
        %960 = vmatpush2.xpose.msra.mxu0 0.0
        %961 = vmatprep.subr.mxu0 0.0
        %962 = vmatpush2.xpose.msra.mxu0 0.0
        %963 = vmatprep.subr.mxu0 0.0
        %964 = vmatpush2.xpose.msra.mxu0 0.0
        %965 = vmatprep.subr.mxu0 0.0
        %966 = vmatpush2.xpose.msra.mxu0 0.0
        %967 = vmatprep.subr.mxu0 0.0
        %968 = vmatpush2.xpose.msra.mxu0 0.0
        %969 = vmatprep.subr.mxu0 0.0
        %970 = vmatpush2.xpose.msra.mxu0 0.0
        %971 = vmatprep.subr.mxu0 0.0
        %972 = vmatpush2.xpose.msra.mxu0 0.0
        %973 = vmatprep.subr.mxu0 0.0
        %974 = vmatpush2.xpose.msra.mxu0 0.0
        %975 = vmatprep.subr.mxu0 0.0
        %976 = vmatpush2.xpose.msra.mxu0 0.0
        %977 = vmatprep.subr.mxu0 0.0
        %978 = vmatpush2.xpose.msra.mxu0 0.0
        %979 = vmatprep.subr.mxu0 0.0
        %980 = vmatpush2.xpose.msra.mxu0 0.0
        %981 = vmatprep.subr.mxu0 0.0
        %982 = vmatpush2.xpose.msra.mxu0 0.0
        %983 = vmatprep.subr.mxu0 0.0
        %984 = vmatpush2.xpose.msra.mxu0 0.0
        %985 = vmatprep.subr.mxu0 0.0
        %986 = vmatpush2.xpose.msra.mxu0 0.0
        %987 = vmatprep.mubr.f32.mxu0 0.0
        %988 = vmatmul.mubr.f32.gmra.mxu0 %v919
        %v989 = vpop.f32.mrf.mxu0
        %v990 = vadd.f32 0.0, %v989
        %v991 = vpop.f32.mrf.mxu0
        %992 = vdwg.mxu0
        %v993 = vsel %vm435, %v990, -inf
        %994 = vmax.xlane.f32.xlu0 %v993
        %v995 = vpop.xlane.xlu0 %994
        %v996 = vsub.f32 %v990, %v995
        %v997 = vmul.f32 %v996, 1.442695
        %v998 = vpow.pop %v997
        %v999 = vsel %vm435, %v998, 0.0
        %1000 = vadd.xlane.f32.xlu0 %v999
        %v1001 = vpop.xlane.xlu0 %1000
        %v1002 = vrcp.pop %v1001
        %v1003 = vmul.f32 %v998, %v1002
        %1004 = vrot.lane.b32.xlu0 %v424, 48
        %v1005 = vpop.permute.xlu0 %1004
        %v1008 = vsel %vm435, %v1003, 0
        %1010 = vmatprep.subr.mxu0 0.0
        %1011 = vmatpush1.msra.mxu0 0.0
        %1012 = vmatprep.subr.mxu0 0.0
        %1013 = vmatpush1.msra.mxu0 0.0
        %1014 = vmatprep.subr.mxu0 0.0
        %1015 = vmatpush1.msra.mxu0 0.0
        %1016 = vmatprep.subr.mxu0 0.0
        %1017 = vmatpush1.msra.mxu0 0.0
        %1018 = vmatprep.subr.mxu0 0.0
        %1019 = vmatpush1.msra.mxu0 0.0
        %1020 = vmatprep.subr.mxu0 0.0
        %1021 = vmatpush1.msra.mxu0 0.0
        %1022 = vmatprep.subr.mxu0 0.0
        %1023 = vmatpush1.msra.mxu0 0.0
        %1024 = vmatprep.subr.mxu0 0.0
        %1025 = vmatpush1.msra.mxu0 0.0
        %1026 = vmatprep.subr.mxu0 0.0
        %1027 = vmatpush1.msra.mxu0 0.0
        %1028 = vmatprep.subr.mxu0 0.0
        %1029 = vmatpush1.msra.mxu0 0.0
        %1030 = vmatprep.subr.mxu0 0.0
        %1031 = vmatpush1.msra.mxu0 0.0
        %1032 = vmatprep.subr.mxu0 0.0
        %1033 = vmatpush1.msra.mxu0 0.0
        %1034 = vmatprep.subr.mxu0 0.0
        %1035 = vmatpush1.msra.mxu0 0.0
        %1036 = vmatprep.subr.mxu0 0.0
        %1037 = vmatpush1.msra.mxu0 0.0
        %1038 = vmatprep.subr.mxu0 0.0
        %1039 = vmatpush1.msra.mxu0 0.0
        %1040 = vmatprep.subr.mxu0 0.0
        %1041 = vmatpush1.msra.mxu0 %v1005
        %1042 = vmatprep.subr.mxu0 0.0
        %1043 = vmatpush2.msra.mxu0 0.0
        %1044 = vmatprep.subr.mxu0 0.0
        %1045 = vmatpush2.msra.mxu0 0.0
        %1046 = vmatprep.subr.mxu0 0.0
        %1047 = vmatpush2.msra.mxu0 0.0
        %1048 = vmatprep.subr.mxu0 0.0
        %1049 = vmatpush2.msra.mxu0 0.0
        %1050 = vmatprep.subr.mxu0 0.0
        %1051 = vmatpush2.msra.mxu0 0.0
        %1052 = vmatprep.subr.mxu0 0.0
        %1053 = vmatpush2.msra.mxu0 0.0
        %1054 = vmatprep.subr.mxu0 0.0
        %1055 = vmatpush2.msra.mxu0 0.0
        %1056 = vmatprep.subr.mxu0 0.0
        %1057 = vmatpush2.msra.mxu0 0.0
        %1058 = vmatprep.subr.mxu0 0.0
        %1059 = vmatpush2.msra.mxu0 0.0
        %1060 = vmatprep.subr.mxu0 0.0
        %1061 = vmatpush2.msra.mxu0 0.0
        %1062 = vmatprep.subr.mxu0 0.0
        %1063 = vmatpush2.msra.mxu0 0.0
        %1064 = vmatprep.subr.mxu0 0.0
        %1065 = vmatpush2.msra.mxu0 0.0
        %1066 = vmatprep.subr.mxu0 0.0
        %1067 = vmatpush2.msra.mxu0 0.0
        %1068 = vmatprep.subr.mxu0 0.0
        %1069 = vmatpush2.msra.mxu0 0.0
        %1070 = vmatprep.subr.mxu0 0.0
        %1071 = vmatpush2.msra.mxu0 0.0
        %1072 = vmatprep.subr.mxu0 0.0
        %1073 = vmatpush2.msra.mxu0 0.0
        %1074 = vmatprep.mubr.f32.mxu0 0.0
        %1075 = vmatmul.mubr.f32.gmra.mxu0 %v1008
        %v1076 = vpop.f32.mrf.mxu0
        %v1077 = vadd.f32 0.0, %v1076
        %v1078 = vpop.f32.mrf.mxu0
        %1079 = vdwg.mxu0
        %v1081 = vsel %vm435, %v1077, 0
        %1083 = vmatprep.subr.mxu0 0.0
        %1084 = vmatpush1.msra.mxu0 0.0
        %1085 = vmatprep.subr.mxu0 0.0
        %1086 = vmatpush1.msra.mxu0 0.0
        %1087 = vmatprep.subr.mxu0 0.0
        %1088 = vmatpush1.msra.mxu0 0.0
        %1089 = vmatprep.subr.mxu0 0.0
        %1090 = vmatpush1.msra.mxu0 0.0
        %1091 = vmatprep.subr.mxu0 0.0
        %1092 = vmatpush1.msra.mxu0 0.0
        %1093 = vmatprep.subr.mxu0 0.0
        %1094 = vmatpush1.msra.mxu0 0.0
        %1095 = vmatprep.subr.mxu0 0.0
        %1096 = vmatpush1.msra.mxu0 0.0
        %1097 = vmatprep.subr.mxu0 0.0
        %1098 = vmatpush1.msra.mxu0 0.0
        %1099 = vmatprep.subr.mxu0 0.0
        %1100 = vmatpush1.msra.mxu0 0.0
        %1101 = vmatprep.subr.mxu0 0.0
        %1102 = vmatpush1.msra.mxu0 0.0
        %1103 = vmatprep.subr.mxu0 0.0
        %1104 = vmatpush1.msra.mxu0 0.0
        %1105 = vmatprep.subr.mxu0 0.0
        %1106 = vmatpush1.msra.mxu0 0.0
        %1107 = vmatprep.subr.mxu0 0.0
        %1108 = vmatpush1.msra.mxu0 0.0
        %1109 = vmatprep.subr.mxu0 0.0
        %1110 = vmatpush1.msra.mxu0 0.0
        %1111 = vmatprep.subr.mxu0 0.0
        %1112 = vmatpush1.msra.mxu0 0.0
        %1113 = vmatprep.subr.mxu0 0.0
        %1114 = vmatpush1.msra.mxu0 %v430
        %1115 = vmatprep.subr.mxu0 0.0
        %1116 = vmatpush2.msra.mxu0 0.0
        %1117 = vmatprep.subr.mxu0 0.0
        %1118 = vmatpush2.msra.mxu0 0.0
        %1119 = vmatprep.subr.mxu0 0.0
        %1120 = vmatpush2.msra.mxu0 0.0
        %1121 = vmatprep.subr.mxu0 0.0
        %1122 = vmatpush2.msra.mxu0 0.0
        %1123 = vmatprep.subr.mxu0 0.0
        %1124 = vmatpush2.msra.mxu0 0.0
        %1125 = vmatprep.subr.mxu0 0.0
        %1126 = vmatpush2.msra.mxu0 0.0
        %1127 = vmatprep.subr.mxu0 0.0
        %1128 = vmatpush2.msra.mxu0 0.0
        %1129 = vmatprep.subr.mxu0 0.0
        %1130 = vmatpush2.msra.mxu0 0.0
        %1131 = vmatprep.subr.mxu0 0.0
        %1132 = vmatpush2.msra.mxu0 0.0
        %1133 = vmatprep.subr.mxu0 0.0
        %1134 = vmatpush2.msra.mxu0 0.0
        %1135 = vmatprep.subr.mxu0 0.0
        %1136 = vmatpush2.msra.mxu0 0.0
        %1137 = vmatprep.subr.mxu0 0.0
        %1138 = vmatpush2.msra.mxu0 0.0
        %1139 = vmatprep.subr.mxu0 0.0
        %1140 = vmatpush2.msra.mxu0 0.0
        %1141 = vmatprep.subr.mxu0 0.0
        %1142 = vmatpush2.msra.mxu0 0.0
        %1143 = vmatprep.subr.mxu0 0.0
        %1144 = vmatpush2.msra.mxu0 0.0
        %1145 = vmatprep.subr.mxu0 0.0
        %1146 = vmatpush2.msra.mxu0 0.0
        %1147 = vmatprep.mubr.f32.mxu0 0.0
        %1148 = vmatmul.mubr.f32.gmra.mxu0 %v1081
        %v1149 = vpop.f32.mrf.mxu0
        %v1150 = vadd.f32 0.0, %v1149
        %v1151 = vpop.f32.mrf.mxu0
        %1152 = vdwg.mxu0
        %v1153 = vadd.f32 %v908, %v1150
        %s1154 = scalar_lea.vmem %s340, 16 [#allocation11]
        %1155 = vst.msk [vmem:[%s1154] sm:$0xff] %vm435, %v990
        %s1156 = scalar_lea.vmem %s333, 16 [#allocation9]
        %1157 = vst.msk [vmem:[%s1156] sm:$0xff] %vm435, %v1003
        %1158 = vrot.lane.b32.xlu0 %v427, 104
        %v1159 = vpop.permute.xlu0 %1158
        %1160 = vrot.lane.b32.xlu0 %v424, 72
        %v1161 = vpop.permute.xlu0 %1160
        %v1162 = vsel %vm435, %v1159, 0
        %v1164 = vsel %vm435, %v1161, 0
        %1166 = vmatprep.subr.mxu0 0.0
        %1167 = vmatpush1.xpose.msra.mxu0 0.0
        %1168 = vmatprep.subr.mxu0 0.0
        %1169 = vmatpush1.xpose.msra.mxu0 0.0
        %1170 = vmatprep.subr.mxu0 0.0
        %1171 = vmatpush1.xpose.msra.mxu0 0.0
        %1172 = vmatprep.subr.mxu0 0.0
        %1173 = vmatpush1.xpose.msra.mxu0 0.0
        %1174 = vmatprep.subr.mxu0 0.0
        %1175 = vmatpush1.xpose.msra.mxu0 0.0
        %1176 = vmatprep.subr.mxu0 0.0
        %1177 = vmatpush1.xpose.msra.mxu0 0.0
        %1178 = vmatprep.subr.mxu0 0.0
        %1179 = vmatpush1.xpose.msra.mxu0 0.0
        %1180 = vmatprep.subr.mxu0 0.0
        %1181 = vmatpush1.xpose.msra.mxu0 0.0
        %1182 = vmatprep.subr.mxu0 0.0
        %1183 = vmatpush1.xpose.msra.mxu0 0.0
        %1184 = vmatprep.subr.mxu0 0.0
        %1185 = vmatpush1.xpose.msra.mxu0 0.0
        %1186 = vmatprep.subr.mxu0 0.0
        %1187 = vmatpush1.xpose.msra.mxu0 0.0
        %1188 = vmatprep.subr.mxu0 0.0
        %1189 = vmatpush1.xpose.msra.mxu0 0.0
        %1190 = vmatprep.subr.mxu0 0.0
        %1191 = vmatpush1.xpose.msra.mxu0 0.0
        %1192 = vmatprep.subr.mxu0 0.0
        %1193 = vmatpush1.xpose.msra.mxu0 0.0
        %1194 = vmatprep.subr.mxu0 0.0
        %1195 = vmatpush1.xpose.msra.mxu0 0.0
        %1196 = vmatprep.subr.mxu0 0.0
        %1197 = vmatpush1.xpose.msra.mxu0 %v1164
        %1198 = vmatprep.subr.mxu0 0.0
        %1199 = vmatpush2.xpose.msra.mxu0 0.0
        %1200 = vmatprep.subr.mxu0 0.0
        %1201 = vmatpush2.xpose.msra.mxu0 0.0
        %1202 = vmatprep.subr.mxu0 0.0
        %1203 = vmatpush2.xpose.msra.mxu0 0.0
        %1204 = vmatprep.subr.mxu0 0.0
        %1205 = vmatpush2.xpose.msra.mxu0 0.0
        %1206 = vmatprep.subr.mxu0 0.0
        %1207 = vmatpush2.xpose.msra.mxu0 0.0
        %1208 = vmatprep.subr.mxu0 0.0
        %1209 = vmatpush2.xpose.msra.mxu0 0.0
        %1210 = vmatprep.subr.mxu0 0.0
        %1211 = vmatpush2.xpose.msra.mxu0 0.0
        %1212 = vmatprep.subr.mxu0 0.0
        %1213 = vmatpush2.xpose.msra.mxu0 0.0
        %1214 = vmatprep.subr.mxu0 0.0
        %1215 = vmatpush2.xpose.msra.mxu0 0.0
        %1216 = vmatprep.subr.mxu0 0.0
        %1217 = vmatpush2.xpose.msra.mxu0 0.0
        %1218 = vmatprep.subr.mxu0 0.0
        %1219 = vmatpush2.xpose.msra.mxu0 0.0
        %1220 = vmatprep.subr.mxu0 0.0
        %1221 = vmatpush2.xpose.msra.mxu0 0.0
        %1222 = vmatprep.subr.mxu0 0.0
        %1223 = vmatpush2.xpose.msra.mxu0 0.0
        %1224 = vmatprep.subr.mxu0 0.0
        %1225 = vmatpush2.xpose.msra.mxu0 0.0
        %1226 = vmatprep.subr.mxu0 0.0
        %1227 = vmatpush2.xpose.msra.mxu0 0.0
        %1228 = vmatprep.subr.mxu0 0.0
        %1229 = vmatpush2.xpose.msra.mxu0 0.0
        %1230 = vmatprep.mubr.f32.mxu0 0.0
        %1231 = vmatmul.mubr.f32.gmra.mxu0 %v1162
        %v1232 = vpop.f32.mrf.mxu0
        %v1233 = vadd.f32 0.0, %v1232
        %v1234 = vpop.f32.mrf.mxu0
        %1235 = vdwg.mxu0
        %v1236 = vsel %vm435, %v1233, -inf
        %1237 = vmax.xlane.f32.xlu0 %v1236
        %v1238 = vpop.xlane.xlu0 %1237
        %v1239 = vsub.f32 %v1233, %v1238
        %v1240 = vmul.f32 %v1239, 1.442695
        %v1241 = vpow.pop %v1240
        %v1242 = vsel %vm435, %v1241, 0.0
        %1243 = vadd.xlane.f32.xlu0 %v1242
        %v1244 = vpop.xlane.xlu0 %1243
        %v1245 = vrcp.pop %v1244
        %v1246 = vmul.f32 %v1241, %v1245
        %1247 = vrot.lane.b32.xlu0 %v424, 40
        %v1248 = vpop.permute.xlu0 %1247
        %v1251 = vsel %vm435, %v1246, 0
        %1253 = vmatprep.subr.mxu0 0.0
        %1254 = vmatpush1.msra.mxu0 0.0
        %1255 = vmatprep.subr.mxu0 0.0
        %1256 = vmatpush1.msra.mxu0 0.0
        %1257 = vmatprep.subr.mxu0 0.0
        %1258 = vmatpush1.msra.mxu0 0.0
        %1259 = vmatprep.subr.mxu0 0.0
        %1260 = vmatpush1.msra.mxu0 0.0
        %1261 = vmatprep.subr.mxu0 0.0
        %1262 = vmatpush1.msra.mxu0 0.0
        %1263 = vmatprep.subr.mxu0 0.0
        %1264 = vmatpush1.msra.mxu0 0.0
        %1265 = vmatprep.subr.mxu0 0.0
        %1266 = vmatpush1.msra.mxu0 0.0
        %1267 = vmatprep.subr.mxu0 0.0
        %1268 = vmatpush1.msra.mxu0 0.0
        %1269 = vmatprep.subr.mxu0 0.0
        %1270 = vmatpush1.msra.mxu0 0.0
        %1271 = vmatprep.subr.mxu0 0.0
        %1272 = vmatpush1.msra.mxu0 0.0
        %1273 = vmatprep.subr.mxu0 0.0
        %1274 = vmatpush1.msra.mxu0 0.0
        %1275 = vmatprep.subr.mxu0 0.0
        %1276 = vmatpush1.msra.mxu0 0.0
        %1277 = vmatprep.subr.mxu0 0.0
        %1278 = vmatpush1.msra.mxu0 0.0
        %1279 = vmatprep.subr.mxu0 0.0
        %1280 = vmatpush1.msra.mxu0 0.0
        %1281 = vmatprep.subr.mxu0 0.0
        %1282 = vmatpush1.msra.mxu0 0.0
        %1283 = vmatprep.subr.mxu0 0.0
        %1284 = vmatpush1.msra.mxu0 %v1248
        %1285 = vmatprep.subr.mxu0 0.0
        %1286 = vmatpush2.msra.mxu0 0.0
        %1287 = vmatprep.subr.mxu0 0.0
        %1288 = vmatpush2.msra.mxu0 0.0
        %1289 = vmatprep.subr.mxu0 0.0
        %1290 = vmatpush2.msra.mxu0 0.0
        %1291 = vmatprep.subr.mxu0 0.0
        %1292 = vmatpush2.msra.mxu0 0.0
        %1293 = vmatprep.subr.mxu0 0.0
        %1294 = vmatpush2.msra.mxu0 0.0
        %1295 = vmatprep.subr.mxu0 0.0
        %1296 = vmatpush2.msra.mxu0 0.0
        %1297 = vmatprep.subr.mxu0 0.0
        %1298 = vmatpush2.msra.mxu0 0.0
        %1299 = vmatprep.subr.mxu0 0.0
        %1300 = vmatpush2.msra.mxu0 0.0
        %1301 = vmatprep.subr.mxu0 0.0
        %1302 = vmatpush2.msra.mxu0 0.0
        %1303 = vmatprep.subr.mxu0 0.0
        %1304 = vmatpush2.msra.mxu0 0.0
        %1305 = vmatprep.subr.mxu0 0.0
        %1306 = vmatpush2.msra.mxu0 0.0
        %1307 = vmatprep.subr.mxu0 0.0
        %1308 = vmatpush2.msra.mxu0 0.0
        %1309 = vmatprep.subr.mxu0 0.0
        %1310 = vmatpush2.msra.mxu0 0.0
        %1311 = vmatprep.subr.mxu0 0.0
        %1312 = vmatpush2.msra.mxu0 0.0
        %1313 = vmatprep.subr.mxu0 0.0
        %1314 = vmatpush2.msra.mxu0 0.0
        %1315 = vmatprep.subr.mxu0 0.0
        %1316 = vmatpush2.msra.mxu0 0.0
        %1317 = vmatprep.mubr.f32.mxu0 0.0
        %1318 = vmatmul.mubr.f32.gmra.mxu0 %v1251
        %v1319 = vpop.f32.mrf.mxu0
        %v1320 = vadd.f32 0.0, %v1319
        %v1321 = vpop.f32.mrf.mxu0
        %1322 = vdwg.mxu0
        %v1324 = vsel %vm435, %v1320, 0
        %1326 = vmatprep.subr.mxu0 0.0
        %1327 = vmatpush1.msra.mxu0 0.0
        %1328 = vmatprep.subr.mxu0 0.0
        %1329 = vmatpush1.msra.mxu0 0.0
        %1330 = vmatprep.subr.mxu0 0.0
        %1331 = vmatpush1.msra.mxu0 0.0
        %1332 = vmatprep.subr.mxu0 0.0
        %1333 = vmatpush1.msra.mxu0 0.0
        %1334 = vmatprep.subr.mxu0 0.0
        %1335 = vmatpush1.msra.mxu0 0.0
        %1336 = vmatprep.subr.mxu0 0.0
        %1337 = vmatpush1.msra.mxu0 0.0
        %1338 = vmatprep.subr.mxu0 0.0
        %1339 = vmatpush1.msra.mxu0 0.0
        %1340 = vmatprep.subr.mxu0 0.0
        %1341 = vmatpush1.msra.mxu0 0.0
        %1342 = vmatprep.subr.mxu0 0.0
        %1343 = vmatpush1.msra.mxu0 0.0
        %1344 = vmatprep.subr.mxu0 0.0
        %1345 = vmatpush1.msra.mxu0 0.0
        %1346 = vmatprep.subr.mxu0 0.0
        %1347 = vmatpush1.msra.mxu0 0.0
        %1348 = vmatprep.subr.mxu0 0.0
        %1349 = vmatpush1.msra.mxu0 0.0
        %1350 = vmatprep.subr.mxu0 0.0
        %1351 = vmatpush1.msra.mxu0 0.0
        %1352 = vmatprep.subr.mxu0 0.0
        %1353 = vmatpush1.msra.mxu0 0.0
        %1354 = vmatprep.subr.mxu0 0.0
        %1355 = vmatpush1.msra.mxu0 0.0
        %1356 = vmatprep.subr.mxu0 0.0
        %1357 = vmatpush1.msra.mxu0 %v431
        %1358 = vmatprep.subr.mxu0 0.0
        %1359 = vmatpush2.msra.mxu0 0.0
        %1360 = vmatprep.subr.mxu0 0.0
        %1361 = vmatpush2.msra.mxu0 0.0
        %1362 = vmatprep.subr.mxu0 0.0
        %1363 = vmatpush2.msra.mxu0 0.0
        %1364 = vmatprep.subr.mxu0 0.0
        %1365 = vmatpush2.msra.mxu0 0.0
        %1366 = vmatprep.subr.mxu0 0.0
        %1367 = vmatpush2.msra.mxu0 0.0
        %1368 = vmatprep.subr.mxu0 0.0
        %1369 = vmatpush2.msra.mxu0 0.0
        %1370 = vmatprep.subr.mxu0 0.0
        %1371 = vmatpush2.msra.mxu0 0.0
        %1372 = vmatprep.subr.mxu0 0.0
        %1373 = vmatpush2.msra.mxu0 0.0
        %1374 = vmatprep.subr.mxu0 0.0
        %1375 = vmatpush2.msra.mxu0 0.0
        %1376 = vmatprep.subr.mxu0 0.0
        %1377 = vmatpush2.msra.mxu0 0.0
        %1378 = vmatprep.subr.mxu0 0.0
        %1379 = vmatpush2.msra.mxu0 0.0
        %1380 = vmatprep.subr.mxu0 0.0
        %1381 = vmatpush2.msra.mxu0 0.0
        %1382 = vmatprep.subr.mxu0 0.0
        %1383 = vmatpush2.msra.mxu0 0.0
        %1384 = vmatprep.subr.mxu0 0.0
        %1385 = vmatpush2.msra.mxu0 0.0
        %1386 = vmatprep.subr.mxu0 0.0
        %1387 = vmatpush2.msra.mxu0 0.0
        %1388 = vmatprep.subr.mxu0 0.0
        %1389 = vmatpush2.msra.mxu0 0.0
        %1390 = vmatprep.mubr.f32.mxu0 0.0
        %1391 = vmatmul.mubr.f32.gmra.mxu0 %v1324
        %v1392 = vpop.f32.mrf.mxu0
        %v1393 = vadd.f32 0.0, %v1392
        %v1394 = vpop.f32.mrf.mxu0
        %1395 = vdwg.mxu0
        %v1396 = vadd.f32 %v1153, %v1393
        %s1397 = scalar_lea.vmem %s340, 24 [#allocation11]
        %1398 = vst.msk [vmem:[%s1397] sm:$0xff] %vm435, %v1233
        %s1399 = scalar_lea.vmem %s333, 24 [#allocation9]
        %1400 = vst.msk [vmem:[%s1399] sm:$0xff] %vm435, %v1246
        %v1401 = vld [vmem:[%s4] sm:$0x1]
        %v1403 = vlaneseq
        %v1404 = vshrl.u32 %v1403, 7
        %v1405 = vsub.s32 0, %v1404
        %v1406 = vrot.slane %v1401, %v1405
        %v1408 = vadd.f32 %v1396, %v1406
        %1409 = vst.msk [vmem:[%s326] sm:$0xff] %vm353, %v1408
        %s1410 = sand.u32 %s147, 1
        %s1411 = scalar_lea.sflag [#allocation4], %s1410
        %s1412 = sand.u32 %s147, 1
        %s1413 = smul.addr %s1412, 8
        %s1414 = scalar_lea.vmem [#allocation8], %s1413
        %s1415 = sand.u32 %s29, 1
        %s1416 = scalar_lea.sflag [#allocation10], %s1415
        %s1417 = sand.u32 %s173, 1
        %s1418 = smul.addr %s1417, 32
        %s1419 = scalar_lea.vmem [#allocation9], %s1418
        %s1420 = sand.u32 %s29, 1
        %s1421 = scalar_lea.sflag [#allocation10], %s1420
        %s1422 = sand.u32 %s199, 1
        %s1423 = smul.addr %s1422, 32
        %s1424 = scalar_lea.vmem [#allocation11], %s1423
        // Predicated region
        $region53: #{tpu_custom_call.1} parent=39 // pred_check
          %p1425 = pneg %p157
        $region54: #{tpu_custom_call.1} parent=39 // pred_check_branch
          %1427 = sbr.rel (%p1425) target = $region56
        $region55: #{tpu_custom_call.1} parent=39 // pred_region
          %s1429 = ssub.s32 128, 128
          %1430 = vsyncadd %s1411, %s1429
          %s1431 = smul.addr %s29, 128
          %s1432 = scalar_lea.hbm %s5, %s1431
          %s1434 = sshll.u32 %s1414, 4
          %s1435 = int_to_ptr.vmem [resolvable:$true] %s1434
          %1437 = dma.vmem_to_hbm [thread:$0]  %s1435, 128, %s1432, %s1411
        $region56: #{tpu_custom_call.1} parent=39 // pred_fallthru
          _
        // Predicated region
        $region57: #{tpu_custom_call.1} parent=39 // pred_check
          %p1438 = pneg %p183
        $region58: #{tpu_custom_call.1} parent=39 // pred_check_branch
          %1440 = sbr.rel (%p1438) target = $region60
        $region59: #{tpu_custom_call.1} parent=39 // pred_region
          %s1442 = ssub.s32 512, 512
          %1443 = vsyncadd %s1416, %s1442
          %s1444 = smul.addr %s29, 4
          %s1445 = smul.addr %s1444, 128
          %s1446 = scalar_lea.hbm %s6, %s1445
          %s1447 = sshll.u32 %s1419, 4
          %s1448 = int_to_ptr.vmem [resolvable:$true] %s1447
          %1453 = dma.vmem_to_hbm [thread:$0]  %s1448, 512, %s1446, %s1416, 128, 128, 8
        $region60: #{tpu_custom_call.1} parent=39 // pred_fallthru
          _
        // Predicated region
        $region61: #{tpu_custom_call.1} parent=39 // pred_check
          %p1454 = pneg %p209
        $region62: #{tpu_custom_call.1} parent=39 // pred_check_branch
          %1456 = sbr.rel (%p1454) target = $region64
        $region63: #{tpu_custom_call.1} parent=39 // pred_region
          %s1458 = ssub.s32 512, 512
          %1459 = vsyncadd %s1421, %s1458
          %s1460 = smul.addr %s29, 4
          %s1461 = smul.addr %s1460, 128
          %s1462 = scalar_lea.hbm %s7, %s1461
          %s1463 = sshll.u32 %s1424, 4
          %s1464 = int_to_ptr.vmem [resolvable:$true] %s1463
          %1469 = dma.vmem_to_hbm [thread:$0]  %s1464, 512, %s1462, %s1421, 128, 128, 8
        $region64: #{tpu_custom_call.1} parent=39 // pred_fallthru
          _
      $region40: #{tpu_custom_call.1} parent=5 // pred_fallthru
        _
      %p1470 = scmp.le.s32.totalorder 2, %s24
      // Predicated region
      $region65: #{tpu_custom_call.1} parent=5 // pred_check
        %p1471 = pneg %p1470
      $region66: #{tpu_custom_call.1} parent=5 // pred_check_branch
        %1473 = sbr.rel (%p1471) target = $region68
      $region67: #{tpu_custom_call.1} parent=5 // pred_region
        %s1474 = ssub.s32 %s24, 2
        // Predicated region
        $region69: #{tpu_custom_call.1} parent=67 // pred_check
          %p1475 = pneg %p163
        $region70: #{tpu_custom_call.1} parent=67 // pred_check_branch
          %1477 = sbr.rel (%p1475) target = $region72
        $region71: #{tpu_custom_call.1} parent=67 // pred_region
          %s1478 = sand.u32 %s148, 1
          %s1479 = scalar_lea.sflag [#allocation4], %s1478
          %s1480 = sand.u32 %s148, 1
          %s1481 = smul.addr %s1480, 8
          %s1482 = scalar_lea.vmem [#allocation8], %s1481
          %1483 = dma.done %s1479, 128
        $region72: #{tpu_custom_call.1} parent=67 // pred_fallthru
          _
        // Predicated region
        $region73: #{tpu_custom_call.1} parent=67 // pred_check
          %p1484 = pneg %p189
        $region74: #{tpu_custom_call.1} parent=67 // pred_check_branch
          %1486 = sbr.rel (%p1484) target = $region76
        $region75: #{tpu_custom_call.1} parent=67 // pred_region
          %s1487 = sand.u32 %s30, 1
          %s1488 = scalar_lea.sflag [#allocation10], %s1487
          %s1489 = sand.u32 %s174, 1
          %s1490 = smul.addr %s1489, 32
          %s1491 = scalar_lea.vmem [#allocation9], %s1490
          %1492 = dma.done %s1488, 512
        $region76: #{tpu_custom_call.1} parent=67 // pred_fallthru
          _
        // Predicated region
        $region77: #{tpu_custom_call.1} parent=67 // pred_check
          %p1493 = pneg %p215
        $region78: #{tpu_custom_call.1} parent=67 // pred_check_branch
          %1495 = sbr.rel (%p1493) target = $region80
        $region79: #{tpu_custom_call.1} parent=67 // pred_region
          %s1496 = sand.u32 %s30, 1
          %s1497 = scalar_lea.sflag [#allocation10], %s1496
          %s1498 = sand.u32 %s200, 1
          %s1499 = smul.addr %s1498, 32
          %s1500 = scalar_lea.vmem [#allocation11], %s1499
          %1501 = dma.done %s1497, 512
        $region80: #{tpu_custom_call.1} parent=67 // pred_fallthru
          _
      $region68: #{tpu_custom_call.1} parent=5 // pred_fallthru
        _
    $region6: #{tpu_custom_call.1} parent=1 // loop_footer
      %s28 = sadd.s32 1, %s24
    $region7: #{tpu_custom_call.1} parent=1 // loop_footer_branch
      %23 = sbr.rel target = $region3
    $region8: #{tpu_custom_call.1} parent=1 // loop_exit
      _
    %1502 = vsyncpa [#allocation3], 1
    %s1503 = scalar_lea.sflag [#allocation3], 1
    %1504 = vsyncpa %s1503, 1
    %1505 = vsyncpa [#allocation6], 1
    %1506 = vsyncpa [#allocation4], 1
    %s1507 = scalar_lea.sflag [#allocation4], 1
    %1508 = vsyncpa %s1507, 1
    %1509 = vsyncpa [#allocation10], 1
    %s1510 = scalar_lea.sflag [#allocation10], 1
    %1511 = vsyncpa %s1510, 1

</llo_original>
